<compile_context>
chip_gen: v6e
topology: v6e:2x2x1
jax: 0.10.0
libtpu: 0.0.40
codegen_flags: <defaults>
</compile_context>

<pallas_src>
import numpy as np
import jax
import jax.numpy as jnp
from jax.experimental import pallas as pl
from jax.experimental.pallas import tpu as pltpu


def salary_kernel(title_ref, desc_ref, cat_ref,
                  w1_ref, b1_ref, w2_ref, b2_ref,
                  wc_ref, bc_ref, wo_ref, bo_ref,
                  out_ref):
    oc1 = b1_ref.shape[1]
    oc2 = b2_ref.shape[1]

    def conv_and_pool(x, w, b, oc):
        # x: [TB, L, E] bf16, w: [E, 2*OC] bf16 (= [Wk0 | Wk1]), b: [1, OC] f32
        tb, l, e = x.shape
        y = jnp.dot(x.reshape(tb * l, e), w,
                    preferred_element_type=jnp.float32)       # [TB*L, 2*OC] f32
        y = y.reshape(tb, l, 2 * oc)                           # [TB, L, 2*OC]
        # Conv1d(k=2): shifted add on the narrow output, then bias.
        s = y[:, :-1, :oc] + y[:, 1:, oc:] + b[None, :, :]     # [TB, L-1, OC]
        s = jnp.maximum(s, 0.0)                                # ReLU
        return jnp.max(s, axis=1)                              # max-pool over time

    x1 = conv_and_pool(title_ref[...], w1_ref[...], b1_ref[...], oc1)
    x2 = conv_and_pool(desc_ref[...], w2_ref[...], b2_ref[...], oc2)

    # fc_cat: Linear(n_cat_features, hid_size)
    x3 = jnp.dot(cat_ref[...], wc_ref[...],
                 preferred_element_type=jnp.float32) + bc_ref[...]

    # fc_out on concat((x1, x2, x3), dim=1): fused [OC1+OC2+HID, 1] weight is
    # sliced in-kernel (split-weight matmuls are mathematically identical).
    wo = wo_ref[...]
    out = (jnp.dot(x1, wo[:oc1], preferred_element_type=jnp.float32)
           + jnp.dot(x2, wo[oc1:oc1 + oc2], preferred_element_type=jnp.float32)
           + jnp.dot(x3, wo[oc1 + oc2:], preferred_element_type=jnp.float32)
           + bo_ref[...])                                      # [TB, 1]
    out_ref[...] = out


def salary_predictor_forward(title_emb, desc_emb, cat, params, *, batch_tile=8):
    """title_emb: [B, Lt, E], desc_emb: [B, Ld, E], cat: [B, n_cat] -> [B]."""
    (w1, b1, w2, b2, wc, bc, wo, bo) = params
    B, lt, E = title_emb.shape
    ld = desc_emb.shape[1]
    n_cat = cat.shape[1]

    tb = min(batch_tile, B)
    assert B % tb == 0, "batch must divide evenly into batch tiles"

    # bf16 operands for the MXU; accumulation stays f32 inside the kernel.
    title_bf = title_emb.astype(jnp.bfloat16)
    desc_bf = desc_emb.astype(jnp.bfloat16)
    cat_bf = cat.astype(jnp.bfloat16)

    def resident(shape):
        # Weights: constant block index -> fetched once, VMEM-resident.
        return pl.BlockSpec(shape, lambda i: (0,) * len(shape))

    out = pl.pallas_call(
        salary_kernel,
        out_shape=jax.ShapeDtypeStruct((B, 1), jnp.float32),
        grid_spec=pltpu.PrefetchScalarGridSpec(
            num_scalar_prefetch=0,
            grid=(B // tb,),
            in_specs=[
                pl.BlockSpec((tb, lt, E), lambda i: (i, 0, 0)),
                pl.BlockSpec((tb, ld, E), lambda i: (i, 0, 0)),
                pl.BlockSpec((tb, n_cat), lambda i: (i, 0)),
                resident(w1.shape), resident(b1.shape),
                resident(w2.shape), resident(b2.shape),
                resident(wc.shape), resident(bc.shape),
                resident(wo.shape), resident(bo.shape),
            ],
            out_specs=pl.BlockSpec((tb, 1), lambda i: (i, 0)),
        ),
        compiler_params=pltpu.CompilerParams(
            dimension_semantics=("parallel",),
        ),
    )(title_bf, desc_bf, cat_bf, w1, b1, w2, b2, wc, bc, wo, bo)
    return out[:, 0]   # matches PyTorch out.squeeze(1) -> [B]


if __name__ == "__main__":
    # Small synthetic shapes consistent with the module's forward pass.
    B = 16             # batch (2 grid steps of 8)
    L_TITLE = 8        # Title sequence length
    L_DESC = 16        # FullDescription sequence length
    N_TOKENS = 64      # vocabulary size
    N_CAT = 16         # number of categorical features
    HID = 64           # hid_size
    E = 300            # embedding_dim (fixed in the module)
    OC1, OC2 = 32, 32  # conv out_channels

    key = jax.random.PRNGKey(0)
    keys = jax.random.split(key, 12)

    # ---- deterministic parameter init (shapes follow SalaryPredictor.__init__) ----
    emb_table = jax.random.normal(keys[0], (N_TOKENS, E), jnp.float32) * 0.1

    # nn.Conv1d(E, 32, 2): weight [O, E, 2], bias [O]
    conv1_w = jax.random.normal(keys[1], (OC1, E, 2), jnp.float32) * 0.05
    conv1_b = jax.random.normal(keys[2], (OC1,), jnp.float32) * 0.05
    conv2_w = jax.random.normal(keys[3], (OC2, E, 2), jnp.float32) * 0.05
    conv2_b = jax.random.normal(keys[4], (OC2,), jnp.float32) * 0.05

    # nn.Linear(N_CAT, HID): weight [HID, N_CAT], bias [HID]
    fc_cat_w = jax.random.normal(keys[5], (HID, N_CAT), jnp.float32) * 0.1
    fc_cat_b = jax.random.normal(keys[6], (HID,), jnp.float32) * 0.1

    # nn.Linear(OC1 + OC2 + HID, 1): weight [1, 128], bias [1]
    fc_out_w = jax.random.normal(keys[7], (1, OC1 + OC2 + HID), jnp.float32) * 0.1
    fc_out_b = jax.random.normal(keys[8], (1,), jnp.float32) * 0.1

    # ---- kernel-friendly fused parameter layouts ----
    w1 = jnp.concatenate([conv1_w[:, :, 0].T, conv1_w[:, :, 1].T],
                         axis=1).astype(jnp.bfloat16)          # [E, 2*OC1]
    b1 = conv1_b.reshape(1, OC1).astype(jnp.float32)
    w2 = jnp.concatenate([conv2_w[:, :, 0].T, conv2_w[:, :, 1].T],
                         axis=1).astype(jnp.bfloat16)          # [E, 2*OC2]
    b2 = conv2_b.reshape(1, OC2).astype(jnp.float32)
    wc = fc_cat_w.T.astype(jnp.bfloat16)                       # [N_CAT, HID]
    bc = fc_cat_b.reshape(1, HID).astype(jnp.float32)
    wo = fc_out_w.T.astype(jnp.float32)                        # [OC1+OC2+HID, 1]
    bo = fc_out_b.reshape(1, 1).astype(jnp.float32)
    params = (w1, b1, w2, b2, wc, bc, wo, bo)

    # ---- deterministic example batch ----
    title_ids = jax.random.randint(keys[9], (B, L_TITLE), 0, N_TOKENS, jnp.int32)
    desc_ids = jax.random.randint(keys[10], (B, L_DESC), 0, N_TOKENS, jnp.int32)
    cat_feats = jax.random.normal(keys[11], (B, N_CAT), jnp.float32)

    # Embedding lookup (gather) as plain-JAX glue outside the kernel.
    title_emb = emb_table[title_ids]   # [B, L_TITLE, E]
    desc_emb = emb_table[desc_ids]     # [B, L_DESC, E]

    out = salary_predictor_forward(title_emb, desc_emb, cat_feats, params,
                                   batch_tile=8)
    out = jax.block_until_ready(out)

    # ---- pure-JAX reference of the same math (bf16 operands, f32 accumulation) ----
    def ref_conv_pool(x, w, b, oc):
        bsz, l, e = x.shape
        y = jnp.dot(x.astype(jnp.bfloat16).reshape(bsz * l, e), w,
                    preferred_element_type=jnp.float32).reshape(bsz, l, 2 * oc)
        s = y[:, :-1, :oc] + y[:, 1:, oc:] + b[None, :, :]
        return jnp.max(jnp.maximum(s, 0.0), axis=1)

    r1 = ref_conv_pool(title_emb, w1, b1, OC1)
    r2 = ref_conv_pool(desc_emb, w2, b2, OC2)
    r3 = jnp.dot(cat_feats.astype(jnp.bfloat16), wc,
                 preferred_element_type=jnp.float32) + bc
    ref = (jnp.concatenate([r1, r2, r3], axis=1) @ wo + bo)[:, 0]

    assert out.shape == (B,)
    np.testing.assert_allclose(np.asarray(out), np.asarray(ref),
                               rtol=1e-2, atol=1e-2)
    print("KERNEL_OK")
</pallas_src>

<mosaic_0001>
module attributes {stable_mosaic.version = 11 : i64} {
  func.func @salary_kernel(%arg0: i32, %arg1: memref<8x8x300xbf16, #tpu.memory_space<vmem>>, %arg2: memref<8x16x300xbf16, #tpu.memory_space<vmem>>, %arg3: memref<8x16xbf16, #tpu.memory_space<vmem>>, %arg4: memref<300x64xbf16, #tpu.memory_space<vmem>>, %arg5: memref<1x32xf32, #tpu.memory_space<vmem>>, %arg6: memref<300x64xbf16, #tpu.memory_space<vmem>>, %arg7: memref<1x32xf32, #tpu.memory_space<vmem>>, %arg8: memref<16x64xbf16, #tpu.memory_space<vmem>>, %arg9: memref<1x64xf32, #tpu.memory_space<vmem>>, %arg10: memref<128x1xf32, #tpu.memory_space<vmem>>, %arg11: memref<1x1xf32, #tpu.memory_space<vmem>>, %arg12: memref<8x1xf32, #tpu.memory_space<vmem>>) attributes {dimension_semantics = [#tpu.dimension_semantics<parallel>], iteration_bounds = array<i64: 2>, scalar_prefetch = 0 : i64, scratch_operands = 0 : i64, tpu.core_type = #tpu.core_type<tc>, window_params = [{transform_indices = @transform_0, window_bounds = array<i64: 8, 8, 300>}, {transform_indices = @transform_1, window_bounds = array<i64: 8, 16, 300>}, {transform_indices = @transform_2, window_bounds = array<i64: 8, 16>}, {pipeline_mode = #tpu.pipeline_mode<synchronous>, transform_indices = @transform_3, window_bounds = array<i64: 300, 64>}, {pipeline_mode = #tpu.pipeline_mode<synchronous>, transform_indices = @transform_4, window_bounds = array<i64: 1, 32>}, {pipeline_mode = #tpu.pipeline_mode<synchronous>, transform_indices = @transform_5, window_bounds = array<i64: 300, 64>}, {pipeline_mode = #tpu.pipeline_mode<synchronous>, transform_indices = @transform_6, window_bounds = array<i64: 1, 32>}, {pipeline_mode = #tpu.pipeline_mode<synchronous>, transform_indices = @transform_7, window_bounds = array<i64: 16, 64>}, {pipeline_mode = #tpu.pipeline_mode<synchronous>, transform_indices = @transform_8, window_bounds = array<i64: 1, 64>}, {pipeline_mode = #tpu.pipeline_mode<synchronous>, transform_indices = @transform_9, window_bounds = array<i64: 128, 1>}, {pipeline_mode = #tpu.pipeline_mode<synchronous>, transform_indices = @transform_10, window_bounds = array<i64: 1, 1>}, {transform_indices = @transform_11, window_bounds = array<i64: 8, 1>}]} {
    %c0 = arith.constant 0 : index
    %c0_0 = arith.constant 0 : index
    %c0_1 = arith.constant 0 : index
    %0 = vector.load %arg1[%c0, %c0_0, %c0_1] : memref<8x8x300xbf16, #tpu.memory_space<vmem>>, vector<8x8x300xbf16>
    %c0_2 = arith.constant 0 : index
    %c0_3 = arith.constant 0 : index
    %1 = vector.load %arg4[%c0_2, %c0_3] : memref<300x64xbf16, #tpu.memory_space<vmem>>, vector<300x64xbf16>
    %c0_4 = arith.constant 0 : index
    %c0_5 = arith.constant 0 : index
    %2 = vector.load %arg5[%c0_4, %c0_5] : memref<1x32xf32, #tpu.memory_space<vmem>>, vector<1x32xf32>
    %3 = vector.shape_cast %0 : vector<8x8x300xbf16> to vector<64x300xbf16>
    %cst = arith.constant dense<0.000000e+00> : vector<64x64xf32>
    %4 = tpu.matmul %3, %1, %cst {dimension_numbers = #tpu.dot_dimension_numbers<[1], [0], [0], [1], [0, 0, 1, 1], [], []>} : vector<64x300xbf16>, vector<300x64xbf16>, vector<64x64xf32> -> vector<64x64xf32>
    %5 = vector.shape_cast %4 : vector<64x64xf32> to vector<8x8x64xf32>
    %6 = vector.extract_strided_slice %5 {offsets = [0, 0, 0], sizes = [8, 7, 32], strides = [1, 1, 1]} : vector<8x8x64xf32> to vector<8x7x32xf32>
    %7 = vector.extract_strided_slice %5 {offsets = [0, 1, 32], sizes = [8, 7, 32], strides = [1, 1, 1]} : vector<8x8x64xf32> to vector<8x7x32xf32>
    %8 = arith.addf %6, %7 : vector<8x7x32xf32>
    %9 = vector.shape_cast %2 : vector<1x32xf32> to vector<1x1x32xf32>
    %10 = vector.broadcast %9 : vector<1x1x32xf32> to vector<8x7x32xf32>
    %11 = arith.addf %8, %10 : vector<8x7x32xf32>
    %cst_6 = arith.constant 0.000000e+00 : f32
    %12 = vector.broadcast %cst_6 : f32 to vector<8x7x32xf32>
    %13 = arith.maximumf %11, %12 : vector<8x7x32xf32>
    %cst_7 = arith.constant dense<0xFF800000> : vector<8x32xf32>
    %14 = vector.multi_reduction <maximumf>, %13, %cst_7 [1] : vector<8x7x32xf32> to vector<8x32xf32>
    %c0_8 = arith.constant 0 : index
    %c0_9 = arith.constant 0 : index
    %c0_10 = arith.constant 0 : index
    %15 = vector.load %arg2[%c0_8, %c0_9, %c0_10] : memref<8x16x300xbf16, #tpu.memory_space<vmem>>, vector<8x16x300xbf16>
    %c0_11 = arith.constant 0 : index
    %c0_12 = arith.constant 0 : index
    %16 = vector.load %arg6[%c0_11, %c0_12] : memref<300x64xbf16, #tpu.memory_space<vmem>>, vector<300x64xbf16>
    %c0_13 = arith.constant 0 : index
    %c0_14 = arith.constant 0 : index
    %17 = vector.load %arg7[%c0_13, %c0_14] : memref<1x32xf32, #tpu.memory_space<vmem>>, vector<1x32xf32>
    %18 = vector.shape_cast %15 : vector<8x16x300xbf16> to vector<128x300xbf16>
    %cst_15 = arith.constant dense<0.000000e+00> : vector<128x64xf32>
    %19 = tpu.matmul %18, %16, %cst_15 {dimension_numbers = #tpu.dot_dimension_numbers<[1], [0], [0], [1], [0, 0, 1, 1], [], []>} : vector<128x300xbf16>, vector<300x64xbf16>, vector<128x64xf32> -> vector<128x64xf32>
    %20 = vector.shape_cast %19 : vector<128x64xf32> to vector<8x16x64xf32>
    %21 = vector.extract_strided_slice %20 {offsets = [0, 0, 0], sizes = [8, 15, 32], strides = [1, 1, 1]} : vector<8x16x64xf32> to vector<8x15x32xf32>
    %22 = vector.extract_strided_slice %20 {offsets = [0, 1, 32], sizes = [8, 15, 32], strides = [1, 1, 1]} : vector<8x16x64xf32> to vector<8x15x32xf32>
    %23 = arith.addf %21, %22 : vector<8x15x32xf32>
    %24 = vector.shape_cast %17 : vector<1x32xf32> to vector<1x1x32xf32>
    %25 = vector.broadcast %24 : vector<1x1x32xf32> to vector<8x15x32xf32>
    %26 = arith.addf %23, %25 : vector<8x15x32xf32>
    %cst_16 = arith.constant 0.000000e+00 : f32
    %27 = vector.broadcast %cst_16 : f32 to vector<8x15x32xf32>
    %28 = arith.maximumf %26, %27 : vector<8x15x32xf32>
    %cst_17 = arith.constant dense<0xFF800000> : vector<8x32xf32>
    %29 = vector.multi_reduction <maximumf>, %28, %cst_17 [1] : vector<8x15x32xf32> to vector<8x32xf32>
    %c0_18 = arith.constant 0 : index
    %c0_19 = arith.constant 0 : index
    %30 = vector.load %arg3[%c0_18, %c0_19] : memref<8x16xbf16, #tpu.memory_space<vmem>>, vector<8x16xbf16>
    %c0_20 = arith.constant 0 : index
    %c0_21 = arith.constant 0 : index
    %31 = vector.load %arg8[%c0_20, %c0_21] : memref<16x64xbf16, #tpu.memory_space<vmem>>, vector<16x64xbf16>
    %cst_22 = arith.constant dense<0.000000e+00> : vector<8x64xf32>
    %32 = tpu.matmul %30, %31, %cst_22 {dimension_numbers = #tpu.dot_dimension_numbers<[1], [0], [0], [1], [0, 0, 1, 1], [], []>} : vector<8x16xbf16>, vector<16x64xbf16>, vector<8x64xf32> -> vector<8x64xf32>
    %c0_23 = arith.constant 0 : index
    %c0_24 = arith.constant 0 : index
    %33 = vector.load %arg9[%c0_23, %c0_24] : memref<1x64xf32, #tpu.memory_space<vmem>>, vector<1x64xf32>
    %34 = vector.broadcast %33 : vector<1x64xf32> to vector<8x64xf32>
    %35 = arith.addf %32, %34 : vector<8x64xf32>
    %c0_25 = arith.constant 0 : index
    %c0_26 = arith.constant 0 : index
    %36 = vector.load %arg10[%c0_25, %c0_26] : memref<128x1xf32, #tpu.memory_space<vmem>>, vector<128x1xf32>
    %37 = vector.extract_strided_slice %36 {offsets = [0, 0], sizes = [32, 1], strides = [1, 1]} : vector<128x1xf32> to vector<32x1xf32>
    %cst_27 = arith.constant dense<0.000000e+00> : vector<8x1xf32>
    %38 = tpu.matmul %14, %37, %cst_27 {dimension_numbers = #tpu.dot_dimension_numbers<[1], [0], [0], [1], [0, 0, 1, 1], [], []>} : vector<8x32xf32>, vector<32x1xf32>, vector<8x1xf32> -> vector<8x1xf32>
    %39 = vector.extract_strided_slice %36 {offsets = [32, 0], sizes = [32, 1], strides = [1, 1]} : vector<128x1xf32> to vector<32x1xf32>
    %cst_28 = arith.constant dense<0.000000e+00> : vector<8x1xf32>
    %40 = tpu.matmul %29, %39, %cst_28 {dimension_numbers = #tpu.dot_dimension_numbers<[1], [0], [0], [1], [0, 0, 1, 1], [], []>} : vector<8x32xf32>, vector<32x1xf32>, vector<8x1xf32> -> vector<8x1xf32>
    %41 = arith.addf %38, %40 : vector<8x1xf32>
    %42 = vector.extract_strided_slice %36 {offsets = [64, 0], sizes = [64, 1], strides = [1, 1]} : vector<128x1xf32> to vector<64x1xf32>
    %cst_29 = arith.constant dense<0.000000e+00> : vector<8x1xf32>
    %43 = tpu.matmul %35, %42, %cst_29 {dimension_numbers = #tpu.dot_dimension_numbers<[1], [0], [0], [1], [0, 0, 1, 1], [], []>} : vector<8x64xf32>, vector<64x1xf32>, vector<8x1xf32> -> vector<8x1xf32>
    %44 = arith.addf %41, %43 : vector<8x1xf32>
    %c0_30 = arith.constant 0 : index
    %c0_31 = arith.constant 0 : index
    %45 = vector.load %arg11[%c0_30, %c0_31] : memref<1x1xf32, #tpu.memory_space<vmem>>, vector<1x1xf32>
    %46 = vector.broadcast %45 : vector<1x1xf32> to vector<8x1xf32>
    %47 = arith.addf %44, %46 : vector<8x1xf32>
    %c0_32 = arith.constant 0 : index
    %c0_33 = arith.constant 0 : index
    %48 = vector.load %arg12[%c0_32, %c0_33] : memref<8x1xf32, #tpu.memory_space<vmem>>, vector<8x1xf32>
    tpu.vector_store %arg12[%c0_32, %c0_33], %47 {strides = array<i32>} : memref<8x1xf32, #tpu.memory_space<vmem>>, vector<8x1xf32>,
    return
  }
  func.func @transform_0(%arg0: i32) -> (i32, i32, i32) {
    %c0_i32 = arith.constant 0 : i32
    %c0_i32_0 = arith.constant 0 : i32
    %c0_i32_1 = arith.constant 0 : i32
    return %arg0, %c0_i32, %c0_i32_0 : i32, i32, i32
  }
  func.func @transform_1(%arg0: i32) -> (i32, i32, i32) {
    %c0_i32 = arith.constant 0 : i32
    %c0_i32_0 = arith.constant 0 : i32
    %c0_i32_1 = arith.constant 0 : i32
    return %arg0, %c0_i32, %c0_i32_0 : i32, i32, i32
  }
  func.func @transform_2(%arg0: i32) -> (i32, i32) {
    %c0_i32 = arith.constant 0 : i32
    %c0_i32_0 = arith.constant 0 : i32
    return %arg0, %c0_i32 : i32, i32
  }
  func.func @transform_3(%arg0: i32) -> (i32, i32) {
    %c0_i32 = arith.constant 0 : i32
    %c0_i32_0 = arith.constant 0 : i32
    %c0_i32_1 = arith.constant 0 : i32
    return %c0_i32, %c0_i32_0 : i32, i32
  }
  func.func @transform_4(%arg0: i32) -> (i32, i32) {
    %c0_i32 = arith.constant 0 : i32
    %c0_i32_0 = arith.constant 0 : i32
    %c0_i32_1 = arith.constant 0 : i32
    return %c0_i32, %c0_i32_0 : i32, i32
  }
  func.func @transform_5(%arg0: i32) -> (i32, i32) {
    %c0_i32 = arith.constant 0 : i32
    %c0_i32_0 = arith.constant 0 : i32
    %c0_i32_1 = arith.constant 0 : i32
    return %c0_i32, %c0_i32_0 : i32, i32
  }
  func.func @transform_6(%arg0: i32) -> (i32, i32) {
    %c0_i32 = arith.constant 0 : i32
    %c0_i32_0 = arith.constant 0 : i32
    %c0_i32_1 = arith.constant 0 : i32
    return %c0_i32, %c0_i32_0 : i32, i32
  }
  func.func @transform_7(%arg0: i32) -> (i32, i32) {
    %c0_i32 = arith.constant 0 : i32
    %c0_i32_0 = arith.constant 0 : i32
    %c0_i32_1 = arith.constant 0 : i32
    return %c0_i32, %c0_i32_0 : i32, i32
  }
  func.func @transform_8(%arg0: i32) -> (i32, i32) {
    %c0_i32 = arith.constant 0 : i32
    %c0_i32_0 = arith.constant 0 : i32
    %c0_i32_1 = arith.constant 0 : i32
    return %c0_i32, %c0_i32_0 : i32, i32
  }
  func.func @transform_9(%arg0: i32) -> (i32, i32) {
    %c0_i32 = arith.constant 0 : i32
    %c0_i32_0 = arith.constant 0 : i32
    %c0_i32_1 = arith.constant 0 : i32
    return %c0_i32, %c0_i32_0 : i32, i32
  }
  func.func @transform_10(%arg0: i32) -> (i32, i32) {
    %c0_i32 = arith.constant 0 : i32
    %c0_i32_0 = arith.constant 0 : i32
    %c0_i32_1 = arith.constant 0 : i32
    return %c0_i32, %c0_i32_0 : i32, i32
  }
  func.func @transform_11(%arg0: i32) -> (i32, i32) {
    %c0_i32 = arith.constant 0 : i32
    %c0_i32_0 = arith.constant 0 : i32
    return %arg0, %c0_i32 : i32, i32
  }
}

</mosaic_0001>

<llo_original>
// kernel: tpu_custom_call.1
$region0: #{tpu_custom_call.1}
  #allocation0 [shape = 'u32[]', space=smem, size = 0x4, offset = 0x4, fixed_abs, tag = 'smem constant byte address 0x4 - core index']
  #allocation1 [shape = 'u32[144,128]{1,0:T(1,128)}', space=vmem, size = 0x12000, scoped, tag = 'internal scratch']
  #allocation2 [shape = 'f32[1,1]{1,0:T(1,128)S(1)}', space=vmem, size = 0x200, scoped, tag = 'scoped memory for tpu_custom_call.1']
  %s0 = inlined_call_operand.vmem [shape: bf16[16,8,300], index: 0, kind: input, shape index: {}]
  %s1 = inlined_call_operand.vmem [shape: bf16[16,16,300], index: 1, kind: input, shape index: {}]
  %s2 = inlined_call_operand.vmem [shape: bf16[16,16], index: 2, kind: input, shape index: {}]
  %s3 = inlined_call_operand.vmem [shape: bf16[300,64], index: 3, kind: input, shape index: {}]
  %s4 = inlined_call_operand.vmem [shape: f32[1,32], index: 4, kind: input, shape index: {}]
  %s5 = inlined_call_operand.vmem [shape: bf16[300,64], index: 5, kind: input, shape index: {}]
  %s6 = inlined_call_operand.vmem [shape: f32[1,32], index: 6, kind: input, shape index: {}]
  %s7 = inlined_call_operand.vmem [shape: bf16[16,64], index: 7, kind: input, shape index: {}]
  %s8 = inlined_call_operand.vmem [shape: f32[1,64], index: 8, kind: input, shape index: {}]
  %s9 = inlined_call_operand.vmem [shape: f32[128,1], index: 9, kind: input, shape index: {}]
  %s10 = inlined_call_operand.<no memory space> [shape: f32[1,1], index: 10, kind: input, shape index: {}]
  %s11 = inlined_call_operand.vmem [shape: f32[16,1], index: 11, kind: output, shape index: {}]
  %s12 = sld [smem:[#allocation0]]
  $region77: #{tpu_custom_call.1} parent=0
    _
  %s14 = ssub.s32 1, %s12
  %s15 = scalar_select 0, %s14, %s12
  %v16 = vstv %s10
  %17 = vst [vmem:[#allocation2] sm:$0x1] %v16
  loop: start=0, step=1, limit=4
  $region2: #{tpu_custom_call.1} parent=0 // loop_pre_header
    _
  $region3: #{tpu_custom_call.1} parent=0 // loop_header
    %s19 = sphi 0, %s23
    %p20 = scmp.ge.s32.totalorder %s19, 4
    %s29 = sphi 0, %s31
    %s32 = sphi 0, %s29
    %s33 = sphi 0, %s32
    %s49 = sphi 0, %s33
    %s55 = sphi 0, %s57
    %s58 = sphi 0, %s55
    %s59 = sphi 0, %s58
    %s75 = sphi 0, %s59
    %s81 = sphi 0, %s83
    %s84 = sphi 0, %s81
    %s85 = sphi 0, %s84
    %s101 = sphi 0, %s85
    %s105 = sphi 0, %s105
    %s107 = sphi 0, %s105
    %s108 = sphi 0, %s107
    %s122 = sphi 0, %s108
    %s126 = sphi 0, %s126
    %s128 = sphi 0, %s126
    %s129 = sphi 0, %s128
    %s143 = sphi 0, %s129
    %s147 = sphi 0, %s147
    %s149 = sphi 0, %s147
    %s150 = sphi 0, %s149
    %s164 = sphi 0, %s150
    %s168 = sphi 0, %s168
    %s170 = sphi 0, %s168
    %s171 = sphi 0, %s170
    %s185 = sphi 0, %s171
    %s189 = sphi 0, %s189
    %s191 = sphi 0, %s189
    %s192 = sphi 0, %s191
    %s206 = sphi 0, %s192
    %s210 = sphi 0, %s210
    %s212 = sphi 0, %s210
    %s213 = sphi 0, %s212
    %s227 = sphi 0, %s213
    %s231 = sphi 0, %s231
    %s233 = sphi 0, %s231
    %s234 = sphi 0, %s233
    %s248 = sphi 0, %s234
    %s252 = sphi 0, %s252
    %s254 = sphi 0, %s252
    %s255 = sphi 0, %s254
    %s269 = sphi 0, %s255
    %s275 = sphi 0, %s277
    %s278 = sphi 0, %s275
    %s279 = sphi 0, %s278
    %s295 = sphi 0, %s279
  $region4: #{tpu_custom_call.1} parent=0 // loop_header_branch
    %22 = sbr.rel (%p20) target = $region8
  $region5: #{tpu_custom_call.1} parent=0 // loop_body
    %s24 = ssub.s32 %s19, 1
    %s25 = ssub.s32 %s19, 2
    %s26 = sadd.s32 %s19, 1
    %s27 = ssub.s32 %s19, %s26
    %p28 = scmp.eq.s32.totalorder %s27, 0
    %s30 = sadd.s32 %s29, 1
    %s31 = scalar_select %p28, %s29, %s30
    %p34 = pneg %p28
    %p35 = scmp.eq.s32.totalorder %s19, 1
    %p36 = por %p34, %p35
    %p37 = scmp.ne.s32.totalorder %s29, %s32
    %p38 = scmp.eq.s32.totalorder %s19, 0
    %p39 = por %p37, %p38
    %p40 = scmp.ne.s32.totalorder %s29, %s32
    %p41 = scmp.eq.s32.totalorder %s24, 1
    %p42 = por %p40, %p41
    %p43 = scmp.ne.s32.totalorder %s32, %s33
    %p44 = scmp.eq.s32.totalorder %s24, 0
    %p45 = por %p43, %p44
    %p46 = scmp.ne.s32.totalorder %s32, %s33
    %p47 = scmp.eq.s32.totalorder %s25, 1
    %p48 = por %p46, %p47
    %p50 = scmp.ne.s32.totalorder %s33, %s49
    %p51 = scmp.eq.s32.totalorder %s25, 0
    %p52 = por %p50, %p51
    %s53 = ssub.s32 %s19, %s26
    %p54 = scmp.eq.s32.totalorder %s53, 0
    %s56 = sadd.s32 %s55, 1
    %s57 = scalar_select %p54, %s55, %s56
    %p60 = pneg %p54
    %p61 = scmp.eq.s32.totalorder %s19, 1
    %p62 = por %p60, %p61
    %p63 = scmp.ne.s32.totalorder %s55, %s58
    %p64 = scmp.eq.s32.totalorder %s19, 0
    %p65 = por %p63, %p64
    %p66 = scmp.ne.s32.totalorder %s55, %s58
    %p67 = scmp.eq.s32.totalorder %s24, 1
    %p68 = por %p66, %p67
    %p69 = scmp.ne.s32.totalorder %s58, %s59
    %p70 = scmp.eq.s32.totalorder %s24, 0
    %p71 = por %p69, %p70
    %p72 = scmp.ne.s32.totalorder %s58, %s59
    %p73 = scmp.eq.s32.totalorder %s25, 1
    %p74 = por %p72, %p73
    %p76 = scmp.ne.s32.totalorder %s59, %s75
    %p77 = scmp.eq.s32.totalorder %s25, 0
    %p78 = por %p76, %p77
    %s79 = ssub.s32 %s19, %s26
    %p80 = scmp.eq.s32.totalorder %s79, 0
    %s82 = sadd.s32 %s81, 1
    %s83 = scalar_select %p80, %s81, %s82
    %p86 = pneg %p80
    %p87 = scmp.eq.s32.totalorder %s19, 1
    %p88 = por %p86, %p87
    %p89 = scmp.ne.s32.totalorder %s81, %s84
    %p90 = scmp.eq.s32.totalorder %s19, 0
    %p91 = por %p89, %p90
    %p92 = scmp.ne.s32.totalorder %s81, %s84
    %p93 = scmp.eq.s32.totalorder %s24, 1
    %p94 = por %p92, %p93
    %p95 = scmp.ne.s32.totalorder %s84, %s85
    %p96 = scmp.eq.s32.totalorder %s24, 0
    %p97 = por %p95, %p96
    %p98 = scmp.ne.s32.totalorder %s84, %s85
    %p99 = scmp.eq.s32.totalorder %s25, 1
    %p100 = por %p98, %p99
    %p102 = scmp.ne.s32.totalorder %s85, %s101
    %p103 = scmp.eq.s32.totalorder %s25, 0
    %p104 = por %p102, %p103
    %s106 = sadd.s32 %s105, 1
    %p109 = scmp.eq.s32.totalorder %s19, 1
    %p110 = scmp.ne.s32.totalorder %s105, %s107
    %p111 = scmp.eq.s32.totalorder %s19, 0
    %p112 = por %p110, %p111
    %p113 = scmp.ne.s32.totalorder %s105, %s107
    %p114 = scmp.eq.s32.totalorder %s24, 1
    %p115 = por %p113, %p114
    %p116 = scmp.ne.s32.totalorder %s107, %s108
    %p117 = scmp.eq.s32.totalorder %s24, 0
    %p118 = por %p116, %p117
    %p119 = scmp.ne.s32.totalorder %s107, %s108
    %p120 = scmp.eq.s32.totalorder %s25, 1
    %p121 = por %p119, %p120
    %p123 = scmp.ne.s32.totalorder %s108, %s122
    %p124 = scmp.eq.s32.totalorder %s25, 0
    %p125 = por %p123, %p124
    %s127 = sadd.s32 %s126, 1
    %p130 = scmp.eq.s32.totalorder %s19, 1
    %p131 = scmp.ne.s32.totalorder %s126, %s128
    %p132 = scmp.eq.s32.totalorder %s19, 0
    %p133 = por %p131, %p132
    %p134 = scmp.ne.s32.totalorder %s126, %s128
    %p135 = scmp.eq.s32.totalorder %s24, 1
    %p136 = por %p134, %p135
    %p137 = scmp.ne.s32.totalorder %s128, %s129
    %p138 = scmp.eq.s32.totalorder %s24, 0
    %p139 = por %p137, %p138
    %p140 = scmp.ne.s32.totalorder %s128, %s129
    %p141 = scmp.eq.s32.totalorder %s25, 1
    %p142 = por %p140, %p141
    %p144 = scmp.ne.s32.totalorder %s129, %s143
    %p145 = scmp.eq.s32.totalorder %s25, 0
    %p146 = por %p144, %p145
    %s148 = sadd.s32 %s147, 1
    %p151 = scmp.eq.s32.totalorder %s19, 1
    %p152 = scmp.ne.s32.totalorder %s147, %s149
    %p153 = scmp.eq.s32.totalorder %s19, 0
    %p154 = por %p152, %p153
    %p155 = scmp.ne.s32.totalorder %s147, %s149
    %p156 = scmp.eq.s32.totalorder %s24, 1
    %p157 = por %p155, %p156
    %p158 = scmp.ne.s32.totalorder %s149, %s150
    %p159 = scmp.eq.s32.totalorder %s24, 0
    %p160 = por %p158, %p159
    %p161 = scmp.ne.s32.totalorder %s149, %s150
    %p162 = scmp.eq.s32.totalorder %s25, 1
    %p163 = por %p161, %p162
    %p165 = scmp.ne.s32.totalorder %s150, %s164
    %p166 = scmp.eq.s32.totalorder %s25, 0
    %p167 = por %p165, %p166
    %s169 = sadd.s32 %s168, 1
    %p172 = scmp.eq.s32.totalorder %s19, 1
    %p173 = scmp.ne.s32.totalorder %s168, %s170
    %p174 = scmp.eq.s32.totalorder %s19, 0
    %p175 = por %p173, %p174
    %p176 = scmp.ne.s32.totalorder %s168, %s170
    %p177 = scmp.eq.s32.totalorder %s24, 1
    %p178 = por %p176, %p177
    %p179 = scmp.ne.s32.totalorder %s170, %s171
    %p180 = scmp.eq.s32.totalorder %s24, 0
    %p181 = por %p179, %p180
    %p182 = scmp.ne.s32.totalorder %s170, %s171
    %p183 = scmp.eq.s32.totalorder %s25, 1
    %p184 = por %p182, %p183
    %p186 = scmp.ne.s32.totalorder %s171, %s185
    %p187 = scmp.eq.s32.totalorder %s25, 0
    %p188 = por %p186, %p187
    %s190 = sadd.s32 %s189, 1
    %p193 = scmp.eq.s32.totalorder %s19, 1
    %p194 = scmp.ne.s32.totalorder %s189, %s191
    %p195 = scmp.eq.s32.totalorder %s19, 0
    %p196 = por %p194, %p195
    %p197 = scmp.ne.s32.totalorder %s189, %s191
    %p198 = scmp.eq.s32.totalorder %s24, 1
    %p199 = por %p197, %p198
    %p200 = scmp.ne.s32.totalorder %s191, %s192
    %p201 = scmp.eq.s32.totalorder %s24, 0
    %p202 = por %p200, %p201
    %p203 = scmp.ne.s32.totalorder %s191, %s192
    %p204 = scmp.eq.s32.totalorder %s25, 1
    %p205 = por %p203, %p204
    %p207 = scmp.ne.s32.totalorder %s192, %s206
    %p208 = scmp.eq.s32.totalorder %s25, 0
    %p209 = por %p207, %p208
    %s211 = sadd.s32 %s210, 1
    %p214 = scmp.eq.s32.totalorder %s19, 1
    %p215 = scmp.ne.s32.totalorder %s210, %s212
    %p216 = scmp.eq.s32.totalorder %s19, 0
    %p217 = por %p215, %p216
    %p218 = scmp.ne.s32.totalorder %s210, %s212
    %p219 = scmp.eq.s32.totalorder %s24, 1
    %p220 = por %p218, %p219
    %p221 = scmp.ne.s32.totalorder %s212, %s213
    %p222 = scmp.eq.s32.totalorder %s24, 0
    %p223 = por %p221, %p222
    %p224 = scmp.ne.s32.totalorder %s212, %s213
    %p225 = scmp.eq.s32.totalorder %s25, 1
    %p226 = por %p224, %p225
    %p228 = scmp.ne.s32.totalorder %s213, %s227
    %p229 = scmp.eq.s32.totalorder %s25, 0
    %p230 = por %p228, %p229
    %s232 = sadd.s32 %s231, 1
    %p235 = scmp.eq.s32.totalorder %s19, 1
    %p236 = scmp.ne.s32.totalorder %s231, %s233
    %p237 = scmp.eq.s32.totalorder %s19, 0
    %p238 = por %p236, %p237
    %p239 = scmp.ne.s32.totalorder %s231, %s233
    %p240 = scmp.eq.s32.totalorder %s24, 1
    %p241 = por %p239, %p240
    %p242 = scmp.ne.s32.totalorder %s233, %s234
    %p243 = scmp.eq.s32.totalorder %s24, 0
    %p244 = por %p242, %p243
    %p245 = scmp.ne.s32.totalorder %s233, %s234
    %p246 = scmp.eq.s32.totalorder %s25, 1
    %p247 = por %p245, %p246
    %p249 = scmp.ne.s32.totalorder %s234, %s248
    %p250 = scmp.eq.s32.totalorder %s25, 0
    %p251 = por %p249, %p250
    %s253 = sadd.s32 %s252, 1
    %p256 = scmp.eq.s32.totalorder %s19, 1
    %p257 = scmp.ne.s32.totalorder %s252, %s254
    %p258 = scmp.eq.s32.totalorder %s19, 0
    %p259 = por %p257, %p258
    %p260 = scmp.ne.s32.totalorder %s252, %s254
    %p261 = scmp.eq.s32.totalorder %s24, 1
    %p262 = por %p260, %p261
    %p263 = scmp.ne.s32.totalorder %s254, %s255
    %p264 = scmp.eq.s32.totalorder %s24, 0
    %p265 = por %p263, %p264
    %p266 = scmp.ne.s32.totalorder %s254, %s255
    %p267 = scmp.eq.s32.totalorder %s25, 1
    %p268 = por %p266, %p267
    %p270 = scmp.ne.s32.totalorder %s255, %s269
    %p271 = scmp.eq.s32.totalorder %s25, 0
    %p272 = por %p270, %p271
    %s273 = ssub.s32 %s19, %s26
    %p274 = scmp.eq.s32.totalorder %s273, 0
    %s276 = sadd.s32 %s275, 1
    %s277 = scalar_select %p274, %s275, %s276
    %p280 = pneg %p274
    %p281 = scmp.eq.s32.totalorder %s19, 1
    %p282 = por %p280, %p281
    %p283 = scmp.ne.s32.totalorder %s275, %s278
    %p284 = scmp.eq.s32.totalorder %s19, 0
    %p285 = por %p283, %p284
    %p286 = scmp.ne.s32.totalorder %s275, %s278
    %p287 = scmp.eq.s32.totalorder %s24, 1
    %p288 = por %p286, %p287
    %p289 = scmp.ne.s32.totalorder %s278, %s279
    %p290 = scmp.eq.s32.totalorder %s24, 0
    %p291 = por %p289, %p290
    %p292 = scmp.ne.s32.totalorder %s278, %s279
    %p293 = scmp.eq.s32.totalorder %s25, 1
    %p294 = por %p292, %p293
    %p296 = scmp.ne.s32.totalorder %s279, %s295
    %p297 = scmp.eq.s32.totalorder %s25, 0
    %p298 = por %p296, %p297
    %p299 = scmp.le.s32.totalorder 1, %s19
    %p300 = scmp.lt.s32.totalorder %s19, 3
    %p301 = pnand %p299, %p300
    %p302 = pneg %p301
    // Predicated region
    $region9: #{tpu_custom_call.1} parent=5 // pred_check
      _
    $region10: #{tpu_custom_call.1} parent=5 // pred_check_branch
      %304 = sbr.rel (%p301) target = $region12
    $region11: #{tpu_custom_call.1} parent=5 // pred_region
      %s305 = ssub.s32 %s19, 1
      // Predicated region
      $region13: #{tpu_custom_call.1} parent=11 // pred_check
        %p306 = pneg %p118
      $region14: #{tpu_custom_call.1} parent=11 // pred_check_branch
        %308 = sbr.rel (%p306) target = $region16
      $region15: #{tpu_custom_call.1} parent=11 // pred_region
        _
      $region16: #{tpu_custom_call.1} parent=11 // pred_fallthru
        _
      // Predicated region
      $region17: #{tpu_custom_call.1} parent=11 // pred_check
        %p309 = pneg %p139
      $region18: #{tpu_custom_call.1} parent=11 // pred_check_branch
        %311 = sbr.rel (%p309) target = $region20
      $region19: #{tpu_custom_call.1} parent=11 // pred_region
        _
      $region20: #{tpu_custom_call.1} parent=11 // pred_fallthru
        _
      // Predicated region
      $region21: #{tpu_custom_call.1} parent=11 // pred_check
        %p312 = pneg %p160
      $region22: #{tpu_custom_call.1} parent=11 // pred_check_branch
        %314 = sbr.rel (%p312) target = $region24
      $region23: #{tpu_custom_call.1} parent=11 // pred_region
        _
      $region24: #{tpu_custom_call.1} parent=11 // pred_fallthru
        _
      // Predicated region
      $region25: #{tpu_custom_call.1} parent=11 // pred_check
        %p315 = pneg %p181
      $region26: #{tpu_custom_call.1} parent=11 // pred_check_branch
        %317 = sbr.rel (%p315) target = $region28
      $region27: #{tpu_custom_call.1} parent=11 // pred_region
        _
      $region28: #{tpu_custom_call.1} parent=11 // pred_fallthru
        _
      // Predicated region
      $region29: #{tpu_custom_call.1} parent=11 // pred_check
        %p318 = pneg %p202
      $region30: #{tpu_custom_call.1} parent=11 // pred_check_branch
        %320 = sbr.rel (%p318) target = $region32
      $region31: #{tpu_custom_call.1} parent=11 // pred_region
        _
      $region32: #{tpu_custom_call.1} parent=11 // pred_fallthru
        _
      // Predicated region
      $region33: #{tpu_custom_call.1} parent=11 // pred_check
        %p321 = pneg %p223
      $region34: #{tpu_custom_call.1} parent=11 // pred_check_branch
        %323 = sbr.rel (%p321) target = $region36
      $region35: #{tpu_custom_call.1} parent=11 // pred_region
        _
      $region36: #{tpu_custom_call.1} parent=11 // pred_fallthru
        _
      // Predicated region
      $region37: #{tpu_custom_call.1} parent=11 // pred_check
        %p324 = pneg %p244
      $region38: #{tpu_custom_call.1} parent=11 // pred_check_branch
        %326 = sbr.rel (%p324) target = $region40
      $region39: #{tpu_custom_call.1} parent=11 // pred_region
        _
      $region40: #{tpu_custom_call.1} parent=11 // pred_fallthru
        _
      // Predicated region
      $region41: #{tpu_custom_call.1} parent=11 // pred_check
        %p327 = pneg %p265
      $region42: #{tpu_custom_call.1} parent=11 // pred_check_branch
        %329 = sbr.rel (%p327) target = $region44
      $region43: #{tpu_custom_call.1} parent=11 // pred_region
        _
      $region44: #{tpu_custom_call.1} parent=11 // pred_fallthru
        _
    $region12: #{tpu_custom_call.1} parent=5 // pred_fallthru
      _
    %p330 = scmp.lt.s32.totalorder %s19, 2
    // Predicated region
    $region45: #{tpu_custom_call.1} parent=5 // pred_check
      %p331 = pneg %p330
    $region46: #{tpu_custom_call.1} parent=5 // pred_check_branch
      %333 = sbr.rel (%p331) target = $region48
    $region47: #{tpu_custom_call.1} parent=5 // pred_region
      // Predicated region
      $region49: #{tpu_custom_call.1} parent=47 // pred_check
        %p334 = pneg %p39
      $region50: #{tpu_custom_call.1} parent=47 // pred_check_branch
        %336 = sbr.rel (%p334) target = $region52
      $region51: #{tpu_custom_call.1} parent=47 // pred_region
        %s337 = smul.u32 8, %s19
        %p338 = scmp.lt.s32.totalorder %s337, 15
        %s339 = scalar_select %p338, %s337, 15
        %s340 = smul.addr %s339, 3
        %s341 = smul.addr %s340, 4
        %s342 = scalar_lea.vmem %s0, %s341
        %s343 = smul.u32 8, %s19
      $region52: #{tpu_custom_call.1} parent=47 // pred_fallthru
        _
      // Predicated region
      $region53: #{tpu_custom_call.1} parent=47 // pred_check
        %p344 = pneg %p65
      $region54: #{tpu_custom_call.1} parent=47 // pred_check_branch
        %346 = sbr.rel (%p344) target = $region56
      $region55: #{tpu_custom_call.1} parent=47 // pred_region
        %s347 = smul.u32 8, %s19
        %p348 = scmp.lt.s32.totalorder %s347, 15
        %s349 = scalar_select %p348, %s347, 15
        %s350 = smul.addr %s349, 6
        %s351 = smul.addr %s350, 4
        %s352 = scalar_lea.vmem %s1, %s351
        %s353 = smul.u32 8, %s19
      $region56: #{tpu_custom_call.1} parent=47 // pred_fallthru
        _
      // Predicated region
      $region57: #{tpu_custom_call.1} parent=47 // pred_check
        %p354 = pneg %p91
      $region58: #{tpu_custom_call.1} parent=47 // pred_check_branch
        %356 = sbr.rel (%p354) target = $region60
      $region59: #{tpu_custom_call.1} parent=47 // pred_region
        %p357 = scmp.lt.s32.totalorder %s19, 1
        %s358 = scalar_select %p357, %s19, 1
        %s359 = smul.addr %s358, 4
        %s360 = scalar_lea.vmem %s2, %s359
      $region60: #{tpu_custom_call.1} parent=47 // pred_fallthru
        _
    $region48: #{tpu_custom_call.1} parent=5 // pred_fallthru
      _
    %p361 = scmp.le.s32.totalorder 1, %s19
    %p362 = scmp.lt.s32.totalorder %s19, 3
    %p363 = pnand %p361, %p362
    %p364 = pneg %p363
    // Predicated region
    $region61: #{tpu_custom_call.1} parent=5 // pred_check
      _
    $region62: #{tpu_custom_call.1} parent=5 // pred_check_branch
      %366 = sbr.rel (%p363) target = $region64
    $region63: #{tpu_custom_call.1} parent=5 // pred_region
      %s367 = ssub.s32 %s19, 1
      %s368 = smul.u32 8, %s24
      %p369 = scmp.lt.s32.totalorder %s368, 15
      %s370 = scalar_select %p369, %s368, 15
      %s371 = smul.addr %s370, 3
      %s372 = smul.addr %s371, 4
      %s373 = scalar_lea.vmem %s0, %s372
      %p374 = pneg %p45
      %p375 = pneg %p42
      %s376 = smul.u32 8, %s24
      %p377 = scmp.lt.s32.totalorder %s376, 15
      %s378 = scalar_select %p377, %s376, 15
      %s379 = smul.addr %s378, 6
      %s380 = smul.addr %s379, 4
      %s381 = scalar_lea.vmem %s1, %s380
      %p382 = pneg %p71
      %p383 = pneg %p68
      %p384 = scmp.lt.s32.totalorder %s24, 1
      %s385 = scalar_select %p384, %s24, 1
      %s386 = smul.addr %s385, 4
      %s387 = scalar_lea.vmem %s2, %s386
      %p388 = pneg %p97
      %p389 = pneg %p94
      %p390 = pneg %p118
      %p391 = pneg %p115
      %p392 = pneg %p139
      %p393 = pneg %p136
      %p394 = pneg %p160
      %p395 = pneg %p157
      %p396 = pneg %p181
      %p397 = pneg %p178
      %p398 = pneg %p202
      %p399 = pneg %p199
      %p400 = pneg %p223
      %p401 = pneg %p220
      %p402 = pneg %p244
      %p403 = pneg %p241
      %p404 = pneg %p265
      %p405 = pneg %p262
      %p406 = pneg %p291
      %p407 = pneg %p288
      %p408 = scmp.lt.s32.totalorder %s24, 1
      %s409 = scalar_select %p408, %s24, 1
      %s410 = smul.addr %s409, 8
      %s411 = scalar_lea.vmem %s11, %s410
      %s412 = smul.u32 8, %s24
      %p413 = scmp.lt.s32.totalorder %s412, 15
      %s414 = scalar_select %p413, %s412, 15
      %s415 = smul.addr %s414, 3
      %s416 = smul.addr %s415, 4
      %s417 = scalar_lea.vmem %s0, %s416
      %s418 = smul.u32 8, %s24
      %s419 = smul.u32 8, %s24
      %p420 = scmp.lt.s32.totalorder %s419, 15
      %s421 = scalar_select %p420, %s419, 15
      %s422 = smul.addr %s421, 6
      %s423 = smul.addr %s422, 4
      %s424 = scalar_lea.vmem %s1, %s423
      %s425 = smul.u32 8, %s24
      %p426 = scmp.lt.s32.totalorder %s24, 1
      %s427 = scalar_select %p426, %s24, 1
      %s428 = smul.addr %s427, 4
      %s429 = scalar_lea.vmem %s2, %s428
      %p430 = scmp.lt.s32.totalorder %s24, 1
      %s431 = scalar_select %p430, %s24, 1
      %s432 = smul.addr %s431, 8
      %s433 = scalar_lea.vmem %s11, %s432
      %v435 = vld [vmem:[%s417] sm:$0xff]
      %v436 = vld [vmem:[%s417 + $0x8] sm:$0xf]
      %v437 = vld [vmem:[%s417 + $0xc] sm:$0xff]
      %v438 = vld [vmem:[%s417 + $0x14] sm:$0xf]
      %v439 = vld [vmem:[%s417 + $0x18] sm:$0xff]
      %v440 = vld [vmem:[%s417 + $0x20] sm:$0xf]
      %v441 = vld [vmem:[%s417 + $0x24] sm:$0xff]
      %v442 = vld [vmem:[%s417 + $0x2c] sm:$0xf]
      %v443 = vld [vmem:[%s417 + $0x30] sm:$0xff]
      %v444 = vld [vmem:[%s417 + $0x38] sm:$0xf]
      %v445 = vld [vmem:[%s417 + $0x3c] sm:$0xff]
      %v446 = vld [vmem:[%s417 + $0x44] sm:$0xf]
      %v447 = vld [vmem:[%s417 + $0x48] sm:$0xff]
      %v448 = vld [vmem:[%s417 + $0x50] sm:$0xf]
      %v449 = vld [vmem:[%s417 + $0x54] sm:$0xff]
      %v450 = vld [vmem:[%s417 + $0x5c] sm:$0xf]
      %v451 = vld [vmem:[%s3] sm:$0xf]
      %v452 = vld [vmem:[%s3 + $0x4] sm:$0xf]
      %v453 = vld [vmem:[%s3 + $0x8] sm:$0xf]
      %v454 = vld [vmem:[%s3 + $0xc] sm:$0xf]
      %v455 = vld [vmem:[%s3 + $0x10] sm:$0xf]
      %v456 = vld [vmem:[%s3 + $0x14] sm:$0xf]
      %v457 = vld [vmem:[%s3 + $0x18] sm:$0xf]
      %v458 = vld [vmem:[%s3 + $0x1c] sm:$0xf]
      %v459 = vld [vmem:[%s3 + $0x20] sm:$0xf]
      %v460 = vld [vmem:[%s3 + $0x24] sm:$0xf]
      %v461 = vld [vmem:[%s3 + $0x28] sm:$0xf]
      %v462 = vld [vmem:[%s3 + $0x2c] sm:$0xf]
      %v463 = vld [vmem:[%s3 + $0x30] sm:$0xf]
      %v464 = vld [vmem:[%s3 + $0x34] sm:$0xf]
      %v465 = vld [vmem:[%s3 + $0x38] sm:$0xf]
      %v466 = vld [vmem:[%s3 + $0x3c] sm:$0xf]
      %v467 = vld [vmem:[%s3 + $0x40] sm:$0xf]
      %v468 = vld [vmem:[%s3 + $0x44] sm:$0xf]
      %v469 = vld [vmem:[%s3 + $0x48] sm:$0xf]
      %v470 = vld [vmem:[%s3 + $0x4c] sm:$0xf]
      %v471 = vld [vmem:[%s3 + $0x50] sm:$0xf]
      %v472 = vld [vmem:[%s3 + $0x54] sm:$0xf]
      %v473 = vld [vmem:[%s3 + $0x58] sm:$0xf]
      %v474 = vld [vmem:[%s3 + $0x5c] sm:$0xf]
      %v475 = vld [vmem:[%s3 + $0x60] sm:$0xf]
      %v476 = vld [vmem:[%s3 + $0x64] sm:$0xf]
      %v477 = vld [vmem:[%s3 + $0x68] sm:$0xf]
      %v478 = vld [vmem:[%s3 + $0x6c] sm:$0xf]
      %v479 = vld [vmem:[%s3 + $0x70] sm:$0xf]
      %v480 = vld [vmem:[%s3 + $0x74] sm:$0xf]
      %v481 = vld [vmem:[%s3 + $0x78] sm:$0xf]
      %v482 = vld [vmem:[%s3 + $0x7c] sm:$0xf]
      %v483 = vld [vmem:[%s3 + $0x80] sm:$0xf]
      %v484 = vld [vmem:[%s3 + $0x84] sm:$0xf]
      %v485 = vld [vmem:[%s3 + $0x88] sm:$0xf]
      %v486 = vld [vmem:[%s3 + $0x8c] sm:$0xf]
      %v487 = vld [vmem:[%s3 + $0x90] sm:$0xf]
      %v488 = vld [vmem:[%s3 + $0x94] sm:$0x3]
      %v489 = vld [vmem:[%s4] sm:$0x1]
      %v506 = vunpack.c.l.b16 %v435
      %v507 = vunpack.c.h.b16 %v435
      %v508 = vunpack.c.l.b16 %v436
      %v509 = vunpack.c.l.b16 %v437
      %v510 = vunpack.c.h.b16 %v437
      %v511 = vunpack.c.l.b16 %v438
      %v512 = vunpack.c.l.b16 %v439
      %v513 = vunpack.c.h.b16 %v439
      %v514 = vunpack.c.l.b16 %v440
      %v515 = vunpack.c.l.b16 %v441
      %v516 = vunpack.c.h.b16 %v441
      %v517 = vunpack.c.l.b16 %v442
      %v518 = vunpack.c.l.b16 %v443
      %v519 = vunpack.c.h.b16 %v443
      %v520 = vunpack.c.l.b16 %v444
      %v521 = vunpack.c.l.b16 %v445
      %v522 = vunpack.c.h.b16 %v445
      %v523 = vunpack.c.l.b16 %v446
      %v524 = vunpack.c.l.b16 %v447
      %v525 = vunpack.c.h.b16 %v447
      %v526 = vunpack.c.l.b16 %v448
      %v527 = vunpack.c.l.b16 %v449
      %v528 = vunpack.c.h.b16 %v449
      %v529 = vunpack.c.l.b16 %v450
      %v530 = vpack.c.b16 %v509, %v506
      %v531 = vpack.c.b16 %v510, %v507
      %v532 = vpack.c.b16 %v511, %v508
      %v533 = vpack.c.b16 %v515, %v512
      %v534 = vpack.c.b16 %v516, %v513
      %v535 = vpack.c.b16 %v517, %v514
      %v536 = vpack.c.b16 %v521, %v518
      %v537 = vpack.c.b16 %v522, %v519
      %v538 = vpack.c.b16 %v523, %v520
      %v539 = vpack.c.b16 %v527, %v524
      %v540 = vpack.c.b16 %v528, %v525
      %v541 = vpack.c.b16 %v529, %v526
      %v588 = vunpack.c.l.b16 %v451
      %v589 = vunpack.c.l.b16 %v452
      %v590 = vunpack.c.l.b16 %v453
      %v591 = vunpack.c.l.b16 %v454
      %v592 = vunpack.c.l.b16 %v455
      %v593 = vunpack.c.l.b16 %v456
      %v594 = vunpack.c.l.b16 %v457
      %v595 = vunpack.c.l.b16 %v458
      %v596 = vunpack.c.l.b16 %v459
      %v597 = vunpack.c.l.b16 %v460
      %v598 = vunpack.c.l.b16 %v461
      %v599 = vunpack.c.l.b16 %v462
      %v600 = vunpack.c.l.b16 %v463
      %v601 = vunpack.c.l.b16 %v464
      %v602 = vunpack.c.l.b16 %v465
      %v603 = vunpack.c.l.b16 %v466
      %v604 = vunpack.c.l.b16 %v467
      %v605 = vunpack.c.l.b16 %v468
      %v606 = vunpack.c.l.b16 %v469
      %v607 = vunpack.c.l.b16 %v470
      %v608 = vunpack.c.l.b16 %v471
      %v609 = vunpack.c.l.b16 %v472
      %v610 = vunpack.c.l.b16 %v473
      %v611 = vunpack.c.l.b16 %v474
      %v612 = vunpack.c.l.b16 %v475
      %v613 = vunpack.c.l.b16 %v476
      %v614 = vunpack.c.l.b16 %v477
      %v615 = vunpack.c.l.b16 %v478
      %v616 = vunpack.c.l.b16 %v479
      %v617 = vunpack.c.l.b16 %v480
      %v618 = vunpack.c.l.b16 %v481
      %v619 = vunpack.c.l.b16 %v482
      %v620 = vunpack.c.l.b16 %v483
      %v621 = vunpack.c.l.b16 %v484
      %v622 = vunpack.c.l.b16 %v485
      %v623 = vunpack.c.l.b16 %v486
      %v624 = vunpack.c.l.b16 %v487
      %v625 = vunpack.c.l.b16 %v488
      %v626 = vpack.c.b16 %v589, %v588
      %v627 = vpack.c.b16 %v591, %v590
      %v628 = vpack.c.b16 %v593, %v592
      %v629 = vpack.c.b16 %v595, %v594
      %v630 = vpack.c.b16 %v597, %v596
      %v631 = vpack.c.b16 %v599, %v598
      %v632 = vpack.c.b16 %v601, %v600
      %v633 = vpack.c.b16 %v603, %v602
      %v634 = vpack.c.b16 %v605, %v604
      %v635 = vpack.c.b16 %v607, %v606
      %v636 = vpack.c.b16 %v609, %v608
      %v637 = vpack.c.b16 %v611, %v610
      %v638 = vpack.c.b16 %v613, %v612
      %v639 = vpack.c.b16 %v615, %v614
      %v640 = vpack.c.b16 %v617, %v616
      %v641 = vpack.c.b16 %v619, %v618
      %v642 = vpack.c.b16 %v621, %v620
      %v643 = vpack.c.b16 %v623, %v622
      %v644 = vpack.c.b16 %v625, %v624
      %vm663 = vcmask 359424
      %v665 = vsel %vm663, %v532, 0
      %v668 = vsel %vm663, %v535, 0
      %v671 = vsel %vm663, %v538, 0
      %v674 = vsel %vm663, %v541, 0
      %vm676 = vcmask 1045504
      %v678 = vsel %vm676, %v644, 0
      %680 = vmatprep.subr.bf16.mxu0 0
      %681 = vmatpush1.bf16.msra.mxu0 %v633
      %682 = vmatprep.subr.bf16.mxu0 0
      %683 = vmatpush1.bf16.msra.mxu0 %v632
      %684 = vmatprep.subr.bf16.mxu0 0
      %685 = vmatpush1.bf16.msra.mxu0 %v631
      %686 = vmatprep.subr.bf16.mxu0 0
      %687 = vmatpush1.bf16.msra.mxu0 %v630
      %688 = vmatprep.subr.bf16.mxu0 0
      %689 = vmatpush1.bf16.msra.mxu0 %v629
      %690 = vmatprep.subr.bf16.mxu0 0
      %691 = vmatpush1.bf16.msra.mxu0 %v628
      %692 = vmatprep.subr.bf16.mxu0 0
      %693 = vmatpush1.bf16.msra.mxu0 %v627
      %694 = vmatprep.subr.bf16.mxu0 0
      %695 = vmatpush1.bf16.msra.mxu0 %v626
      %696 = vmatprep.subr.bf16.mxu0 0
      %697 = vmatpush2.bf16.msra.mxu0 %v641
      %698 = vmatprep.subr.bf16.mxu0 0
      %699 = vmatpush2.bf16.msra.mxu0 %v640
      %700 = vmatprep.subr.bf16.mxu0 0
      %701 = vmatpush2.bf16.msra.mxu0 %v639
      %702 = vmatprep.subr.bf16.mxu0 0
      %703 = vmatpush2.bf16.msra.mxu0 %v638
      %704 = vmatprep.subr.bf16.mxu0 0
      %705 = vmatpush2.bf16.msra.mxu0 %v637
      %706 = vmatprep.subr.bf16.mxu0 0
      %707 = vmatpush2.bf16.msra.mxu0 %v636
      %708 = vmatprep.subr.bf16.mxu0 0
      %709 = vmatpush2.bf16.msra.mxu0 %v635
      %710 = vmatprep.subr.bf16.mxu0 0
      %711 = vmatpush2.bf16.msra.mxu0 %v634
      %712 = vmatprep.mubr.bf16.mxu0 %v531
      %713 = vmatmul.mubr.bf16.gmra.mxu0 %v530
      %v714 = vpop.f32.mrf.mxu0
      %v715 = vadd.f32 0.0, %v714
      %v716 = vpop.f32.mrf.mxu0
      %v717 = vpop.f32.mrf.mxu0
      %v718 = vadd.f32 0.0, %v717
      %v719 = vpop.f32.mrf.mxu0
      %720 = vmatprep.mubr.bf16.mxu0 %v534
      %721 = vmatmul.mubr.bf16.gmra.mxu0 %v533
      %v722 = vpop.f32.mrf.mxu0
      %v723 = vadd.f32 0.0, %v722
      %v724 = vpop.f32.mrf.mxu0
      %v725 = vpop.f32.mrf.mxu0
      %v726 = vadd.f32 0.0, %v725
      %v727 = vpop.f32.mrf.mxu0
      %728 = vmatprep.mubr.bf16.mxu0 %v537
      %729 = vmatmul.mubr.bf16.gmra.mxu0 %v536
      %v730 = vpop.f32.mrf.mxu0
      %v731 = vadd.f32 0.0, %v730
      %v732 = vpop.f32.mrf.mxu0
      %v733 = vpop.f32.mrf.mxu0
      %v734 = vadd.f32 0.0, %v733
      %v735 = vpop.f32.mrf.mxu0
      %736 = vmatprep.mubr.bf16.mxu0 %v540
      %737 = vmatmul.mubr.bf16.gmra.mxu0 %v539
      %v738 = vpop.f32.mrf.mxu0
      %v739 = vadd.f32 0.0, %v738
      %v740 = vpop.f32.mrf.mxu0
      %v741 = vpop.f32.mrf.mxu0
      %v742 = vadd.f32 0.0, %v741
      %v743 = vpop.f32.mrf.mxu0
      %744 = vdwg.mxu0
      %745 = vmatprep.subr.bf16.mxu0 0
      %746 = vmatpush1.bf16.msra.mxu0 0
      %747 = vmatprep.subr.bf16.mxu0 0
      %748 = vmatpush1.bf16.msra.mxu0 0
      %749 = vmatprep.subr.bf16.mxu0 0
      %750 = vmatpush1.bf16.msra.mxu0 0
      %751 = vmatprep.subr.bf16.mxu0 0
      %752 = vmatpush1.bf16.msra.mxu0 0
      %753 = vmatprep.subr.bf16.mxu0 0
      %754 = vmatpush1.bf16.msra.mxu0 0
      %755 = vmatprep.subr.bf16.mxu0 0
      %756 = vmatpush1.bf16.msra.mxu0 %v678
      %757 = vmatprep.subr.bf16.mxu0 0
      %758 = vmatpush1.bf16.msra.mxu0 %v643
      %759 = vmatprep.subr.bf16.mxu0 0
      %760 = vmatpush1.bf16.msra.mxu0 %v642
      %761 = vmatprep.subr.bf16.mxu0 0
      %762 = vmatpush2.bf16.msra.mxu0 0
      %763 = vmatprep.subr.bf16.mxu0 0
      %764 = vmatpush2.bf16.msra.mxu0 0
      %765 = vmatprep.subr.bf16.mxu0 0
      %766 = vmatpush2.bf16.msra.mxu0 0
      %767 = vmatprep.subr.bf16.mxu0 0
      %768 = vmatpush2.bf16.msra.mxu0 0
      %769 = vmatprep.subr.bf16.mxu0 0
      %770 = vmatpush2.bf16.msra.mxu0 0
      %771 = vmatprep.subr.bf16.mxu0 0
      %772 = vmatpush2.bf16.msra.mxu0 0
      %773 = vmatprep.subr.bf16.mxu0 0
      %774 = vmatpush2.bf16.msra.mxu0 0
      %775 = vmatprep.subr.bf16.mxu0 0
      %776 = vmatpush2.bf16.msra.mxu0 0
      %777 = vmatprep.mubr.bf16.mxu0 0
      %778 = vmatmul.mubr.bf16.gmra.mxu0 %v665
      %v779 = vpop.f32.mrf.mxu0
      %v780 = vadd.f32 %v715, %v779
      %v781 = vpop.f32.mrf.mxu0
      %v782 = vpop.f32.mrf.mxu0
      %v783 = vadd.f32 %v718, %v782
      %v784 = vpop.f32.mrf.mxu0
      %785 = vmatprep.mubr.bf16.mxu0 0
      %786 = vmatmul.mubr.bf16.gmra.mxu0 %v668
      %v787 = vpop.f32.mrf.mxu0
      %v788 = vadd.f32 %v723, %v787
      %v789 = vpop.f32.mrf.mxu0
      %v790 = vpop.f32.mrf.mxu0
      %v791 = vadd.f32 %v726, %v790
      %v792 = vpop.f32.mrf.mxu0
      %793 = vmatprep.mubr.bf16.mxu0 0
      %794 = vmatmul.mubr.bf16.gmra.mxu0 %v671
      %v795 = vpop.f32.mrf.mxu0
      %v796 = vadd.f32 %v731, %v795
      %v797 = vpop.f32.mrf.mxu0
      %v798 = vpop.f32.mrf.mxu0
      %v799 = vadd.f32 %v734, %v798
      %v800 = vpop.f32.mrf.mxu0
      %801 = vmatprep.mubr.bf16.mxu0 0
      %802 = vmatmul.mubr.bf16.gmra.mxu0 %v674
      %v803 = vpop.f32.mrf.mxu0
      %v804 = vadd.f32 %v739, %v803
      %v805 = vpop.f32.mrf.mxu0
      %v806 = vpop.f32.mrf.mxu0
      %v807 = vadd.f32 %v742, %v806
      %v808 = vpop.f32.mrf.mxu0
      %809 = vdwg.mxu0
      %v818 = vrot.slane %v780, 1
      %v819 = vrot.slane %v783, 1
      %v820 = vrot.slane %v788, 1
      %v821 = vrot.slane %v791, 1
      %v822 = vrot.slane %v796, 1
      %v823 = vrot.slane %v799, 1
      %v824 = vrot.slane %v804, 1
      %v825 = vrot.slane %v807, 1
      %826 = vrot.lane.b32.xlu0 %v818, 96
      %v827 = vpop.permute.xlu0 %826
      %828 = vrot.lane.b32.xlu0 %v819, 96
      %v829 = vpop.permute.xlu0 %828
      %830 = vrot.lane.b32.xlu0 %v820, 96
      %v831 = vpop.permute.xlu0 %830
      %832 = vrot.lane.b32.xlu0 %v821, 96
      %v833 = vpop.permute.xlu0 %832
      %834 = vrot.lane.b32.xlu0 %v822, 96
      %v835 = vpop.permute.xlu0 %834
      %836 = vrot.lane.b32.xlu0 %v823, 96
      %v837 = vpop.permute.xlu0 %836
      %838 = vrot.lane.b32.xlu0 %v824, 96
      %v839 = vpop.permute.xlu0 %838
      %840 = vrot.lane.b32.xlu0 %v825, 96
      %v841 = vpop.permute.xlu0 %840
      %v850 = vadd.f32 %v780, %v827
      %v851 = vadd.f32 %v783, %v829
      %v852 = vadd.f32 %v788, %v831
      %v853 = vadd.f32 %v791, %v833
      %v854 = vadd.f32 %v796, %v835
      %v855 = vadd.f32 %v799, %v837
      %v856 = vadd.f32 %v804, %v839
      %v857 = vadd.f32 %v807, %v841
      %v859 = vlaneseq
      %v860 = vshrl.u32 %v859, 7
      %v861 = vsub.s32 0, %v860
      %v862 = vrot.slane %v489, %v861
      %v864 = vadd.f32 %v850, %v862
      %v865 = vadd.f32 %v851, %v862
      %v866 = vadd.f32 %v852, %v862
      %v867 = vadd.f32 %v853, %v862
      %v868 = vadd.f32 %v854, %v862
      %v869 = vadd.f32 %v855, %v862
      %v870 = vadd.f32 %v856, %v862
      %v871 = vadd.f32 %v857, %v862
      %v872 = vmax.f32 %v864, 0.0
      %v873 = vmax.f32 %v865, 0.0
      %v874 = vmax.f32 %v866, 0.0
      %v875 = vmax.f32 %v867, 0.0
      %v876 = vmax.f32 %v868, 0.0
      %v877 = vmax.f32 %v869, 0.0
      %v878 = vmax.f32 %v870, 0.0
      %v879 = vmax.f32 %v871, 0.0
      %vm880 = vcmask 260096
      %v881 = vsel %vm880, %v872, -inf
      %v882 = vrot.slane %v881, 4
      %v883 = vmax.f32 %v881, %v882
      %v884 = vrot.slane %v883, 2
      %v885 = vmax.f32 %v883, %v884
      %v886 = vrot.slane %v885, 1
      %v887 = vmax.f32 %v885, %v886
      %v888 = vsel %vm880, %v873, -inf
      %v889 = vrot.slane %v888, 4
      %v890 = vmax.f32 %v888, %v889
      %v891 = vrot.slane %v890, 2
      %v892 = vmax.f32 %v890, %v891
      %v893 = vrot.slane %v892, 1
      %v894 = vmax.f32 %v892, %v893
      %v895 = vsel %vm880, %v874, -inf
      %v896 = vrot.slane %v895, 4
      %v897 = vmax.f32 %v895, %v896
      %v898 = vrot.slane %v897, 2
      %v899 = vmax.f32 %v897, %v898
      %v900 = vrot.slane %v899, 1
      %v901 = vmax.f32 %v899, %v900
      %v902 = vsel %vm880, %v875, -inf
      %v903 = vrot.slane %v902, 4
      %v904 = vmax.f32 %v902, %v903
      %v905 = vrot.slane %v904, 2
      %v906 = vmax.f32 %v904, %v905
      %v907 = vrot.slane %v906, 1
      %v908 = vmax.f32 %v906, %v907
      %v909 = vsel %vm880, %v876, -inf
      %v910 = vrot.slane %v909, 4
      %v911 = vmax.f32 %v909, %v910
      %v912 = vrot.slane %v911, 2
      %v913 = vmax.f32 %v911, %v912
      %v914 = vrot.slane %v913, 1
      %v915 = vmax.f32 %v913, %v914
      %v916 = vsel %vm880, %v877, -inf
      %v917 = vrot.slane %v916, 4
      %v918 = vmax.f32 %v916, %v917
      %v919 = vrot.slane %v918, 2
      %v920 = vmax.f32 %v918, %v919
      %v921 = vrot.slane %v920, 1
      %v922 = vmax.f32 %v920, %v921
      %v923 = vsel %vm880, %v878, -inf
      %v924 = vrot.slane %v923, 4
      %v925 = vmax.f32 %v923, %v924
      %v926 = vrot.slane %v925, 2
      %v927 = vmax.f32 %v925, %v926
      %v928 = vrot.slane %v927, 1
      %v929 = vmax.f32 %v927, %v928
      %v930 = vsel %vm880, %v879, -inf
      %v931 = vrot.slane %v930, 4
      %v932 = vmax.f32 %v930, %v931
      %v933 = vrot.slane %v932, 2
      %v934 = vmax.f32 %v932, %v933
      %v935 = vrot.slane %v934, 1
      %v936 = vmax.f32 %v934, %v935
      %v937 = vld [vmem:[%s424] sm:$0xff]
      %v938 = vld [vmem:[%s424 + $0x8] sm:$0xf]
      %v939 = vld [vmem:[%s424 + $0xc] sm:$0xff]
      %v940 = vld [vmem:[%s424 + $0x14] sm:$0xf]
      %v941 = vld [vmem:[%s424 + $0x18] sm:$0xff]
      %v942 = vld [vmem:[%s424 + $0x20] sm:$0xf]
      %v943 = vld [vmem:[%s424 + $0x24] sm:$0xff]
      %v944 = vld [vmem:[%s424 + $0x2c] sm:$0xf]
      %v945 = vld [vmem:[%s424 + $0x30] sm:$0xff]
      %v946 = vld [vmem:[%s424 + $0x38] sm:$0xf]
      %v947 = vld [vmem:[%s424 + $0x3c] sm:$0xff]
      %v948 = vld [vmem:[%s424 + $0x44] sm:$0xf]
      %v949 = vld [vmem:[%s424 + $0x48] sm:$0xff]
      %v950 = vld [vmem:[%s424 + $0x50] sm:$0xf]
      %v951 = vld [vmem:[%s424 + $0x54] sm:$0xff]
      %v952 = vld [vmem:[%s424 + $0x5c] sm:$0xf]
      %v953 = vld [vmem:[%s424 + $0x60] sm:$0xff]
      %v954 = vld [vmem:[%s424 + $0x68] sm:$0xf]
      %v955 = vld [vmem:[%s424 + $0x6c] sm:$0xff]
      %v956 = vld [vmem:[%s424 + $0x74] sm:$0xf]
      %v957 = vld [vmem:[%s424 + $0x78] sm:$0xff]
      %v958 = vld [vmem:[%s424 + $0x80] sm:$0xf]
      %v959 = vld [vmem:[%s424 + $0x84] sm:$0xff]
      %v960 = vld [vmem:[%s424 + $0x8c] sm:$0xf]
      %v961 = vld [vmem:[%s424 + $0x90] sm:$0xff]
      %v962 = vld [vmem:[%s424 + $0x98] sm:$0xf]
      %v963 = vld [vmem:[%s424 + $0x9c] sm:$0xff]
      %v964 = vld [vmem:[%s424 + $0xa4] sm:$0xf]
      %v965 = vld [vmem:[%s424 + $0xa8] sm:$0xff]
      %v966 = vld [vmem:[%s424 + $0xb0] sm:$0xf]
      %v967 = vld [vmem:[%s424 + $0xb4] sm:$0xff]
      %v968 = vld [vmem:[%s424 + $0xbc] sm:$0xf]
      %v969 = vld [vmem:[%s5] sm:$0xf]
      %v970 = vld [vmem:[%s5 + $0x4] sm:$0xf]
      %v971 = vld [vmem:[%s5 + $0x8] sm:$0xf]
      %v972 = vld [vmem:[%s5 + $0xc] sm:$0xf]
      %v973 = vld [vmem:[%s5 + $0x10] sm:$0xf]
      %v974 = vld [vmem:[%s5 + $0x14] sm:$0xf]
      %v975 = vld [vmem:[%s5 + $0x18] sm:$0xf]
      %v976 = vld [vmem:[%s5 + $0x1c] sm:$0xf]
      %v977 = vld [vmem:[%s5 + $0x20] sm:$0xf]
      %v978 = vld [vmem:[%s5 + $0x24] sm:$0xf]
      %v979 = vld [vmem:[%s5 + $0x28] sm:$0xf]
      %v980 = vld [vmem:[%s5 + $0x2c] sm:$0xf]
      %v981 = vld [vmem:[%s5 + $0x30] sm:$0xf]
      %v982 = vld [vmem:[%s5 + $0x34] sm:$0xf]
      %v983 = vld [vmem:[%s5 + $0x38] sm:$0xf]
      %v984 = vld [vmem:[%s5 + $0x3c] sm:$0xf]
      %v985 = vld [vmem:[%s5 + $0x40] sm:$0xf]
      %v986 = vld [vmem:[%s5 + $0x44] sm:$0xf]
      %v987 = vld [vmem:[%s5 + $0x48] sm:$0xf]
      %v988 = vld [vmem:[%s5 + $0x4c] sm:$0xf]
      %v989 = vld [vmem:[%s5 + $0x50] sm:$0xf]
      %v990 = vld [vmem:[%s5 + $0x54] sm:$0xf]
      %v991 = vld [vmem:[%s5 + $0x58] sm:$0xf]
      %v992 = vld [vmem:[%s5 + $0x5c] sm:$0xf]
      %v993 = vld [vmem:[%s5 + $0x60] sm:$0xf]
      %v994 = vld [vmem:[%s5 + $0x64] sm:$0xf]
      %v995 = vld [vmem:[%s5 + $0x68] sm:$0xf]
      %v996 = vld [vmem:[%s5 + $0x6c] sm:$0xf]
      %v997 = vld [vmem:[%s5 + $0x70] sm:$0xf]
      %v998 = vld [vmem:[%s5 + $0x74] sm:$0xf]
      %v999 = vld [vmem:[%s5 + $0x78] sm:$0xf]
      %v1000 = vld [vmem:[%s5 + $0x7c] sm:$0xf]
      %v1001 = vld [vmem:[%s5 + $0x80] sm:$0xf]
      %v1002 = vld [vmem:[%s5 + $0x84] sm:$0xf]
      %v1003 = vld [vmem:[%s5 + $0x88] sm:$0xf]
      %v1004 = vld [vmem:[%s5 + $0x8c] sm:$0xf]
      %v1005 = vld [vmem:[%s5 + $0x90] sm:$0xf]
      %v1006 = vld [vmem:[%s5 + $0x94] sm:$0x3]
      %v1007 = vld [vmem:[%s6] sm:$0x1]
      %v1040 = vunpack.c.l.b16 %v937
      %v1041 = vunpack.c.h.b16 %v937
      %v1042 = vunpack.c.l.b16 %v938
      %v1043 = vunpack.c.l.b16 %v939
      %v1044 = vunpack.c.h.b16 %v939
      %v1045 = vunpack.c.l.b16 %v940
      %v1046 = vunpack.c.l.b16 %v941
      %v1047 = vunpack.c.h.b16 %v941
      %v1048 = vunpack.c.l.b16 %v942
      %v1049 = vunpack.c.l.b16 %v943
      %v1050 = vunpack.c.h.b16 %v943
      %v1051 = vunpack.c.l.b16 %v944
      %v1052 = vunpack.c.l.b16 %v945
      %v1053 = vunpack.c.h.b16 %v945
      %v1054 = vunpack.c.l.b16 %v946
      %v1055 = vunpack.c.l.b16 %v947
      %v1056 = vunpack.c.h.b16 %v947
      %v1057 = vunpack.c.l.b16 %v948
      %v1058 = vunpack.c.l.b16 %v949
      %v1059 = vunpack.c.h.b16 %v949
      %v1060 = vunpack.c.l.b16 %v950
      %v1061 = vunpack.c.l.b16 %v951
      %v1062 = vunpack.c.h.b16 %v951
      %v1063 = vunpack.c.l.b16 %v952
      %v1064 = vunpack.c.l.b16 %v953
      %v1065 = vunpack.c.h.b16 %v953
      %v1066 = vunpack.c.l.b16 %v954
      %v1067 = vunpack.c.l.b16 %v955
      %v1068 = vunpack.c.h.b16 %v955
      %v1069 = vunpack.c.l.b16 %v956
      %v1070 = vunpack.c.l.b16 %v957
      %v1071 = vunpack.c.h.b16 %v957
      %v1072 = vunpack.c.l.b16 %v958
      %v1073 = vunpack.c.l.b16 %v959
      %v1074 = vunpack.c.h.b16 %v959
      %v1075 = vunpack.c.l.b16 %v960
      %v1076 = vunpack.c.l.b16 %v961
      %v1077 = vunpack.c.h.b16 %v961
      %v1078 = vunpack.c.l.b16 %v962
      %v1079 = vunpack.c.l.b16 %v963
      %v1080 = vunpack.c.h.b16 %v963
      %v1081 = vunpack.c.l.b16 %v964
      %v1082 = vunpack.c.l.b16 %v965
      %v1083 = vunpack.c.h.b16 %v965
      %v1084 = vunpack.c.l.b16 %v966
      %v1085 = vunpack.c.l.b16 %v967
      %v1086 = vunpack.c.h.b16 %v967
      %v1087 = vunpack.c.l.b16 %v968
      %v1088 = vpack.c.b16 %v1043, %v1040
      %v1089 = vpack.c.b16 %v1044, %v1041
      %v1090 = vpack.c.b16 %v1045, %v1042
      %v1091 = vpack.c.b16 %v1049, %v1046
      %v1092 = vpack.c.b16 %v1050, %v1047
      %v1093 = vpack.c.b16 %v1051, %v1048
      %v1094 = vpack.c.b16 %v1055, %v1052
      %v1095 = vpack.c.b16 %v1056, %v1053
      %v1096 = vpack.c.b16 %v1057, %v1054
      %v1097 = vpack.c.b16 %v1061, %v1058
      %v1098 = vpack.c.b16 %v1062, %v1059
      %v1099 = vpack.c.b16 %v1063, %v1060
      %v1100 = vpack.c.b16 %v1067, %v1064
      %v1101 = vpack.c.b16 %v1068, %v1065
      %v1102 = vpack.c.b16 %v1069, %v1066
      %v1103 = vpack.c.b16 %v1073, %v1070
      %v1104 = vpack.c.b16 %v1074, %v1071
      %v1105 = vpack.c.b16 %v1075, %v1072
      %v1106 = vpack.c.b16 %v1079, %v1076
      %v1107 = vpack.c.b16 %v1080, %v1077
      %v1108 = vpack.c.b16 %v1081, %v1078
      %v1109 = vpack.c.b16 %v1085, %v1082
      %v1110 = vpack.c.b16 %v1086, %v1083
      %v1111 = vpack.c.b16 %v1087, %v1084
      %v1166 = vunpack.c.l.b16 %v969
      %v1167 = vunpack.c.l.b16 %v970
      %v1168 = vunpack.c.l.b16 %v971
      %v1169 = vunpack.c.l.b16 %v972
      %v1170 = vunpack.c.l.b16 %v973
      %v1171 = vunpack.c.l.b16 %v974
      %v1172 = vunpack.c.l.b16 %v975
      %v1173 = vunpack.c.l.b16 %v976
      %v1174 = vunpack.c.l.b16 %v977
      %v1175 = vunpack.c.l.b16 %v978
      %v1176 = vunpack.c.l.b16 %v979
      %v1177 = vunpack.c.l.b16 %v980
      %v1178 = vunpack.c.l.b16 %v981
      %v1179 = vunpack.c.l.b16 %v982
      %v1180 = vunpack.c.l.b16 %v983
      %v1181 = vunpack.c.l.b16 %v984
      %v1182 = vunpack.c.l.b16 %v985
      %v1183 = vunpack.c.l.b16 %v986
      %v1184 = vunpack.c.l.b16 %v987
      %v1185 = vunpack.c.l.b16 %v988
      %v1186 = vunpack.c.l.b16 %v989
      %v1187 = vunpack.c.l.b16 %v990
      %v1188 = vunpack.c.l.b16 %v991
      %v1189 = vunpack.c.l.b16 %v992
      %v1190 = vunpack.c.l.b16 %v993
      %v1191 = vunpack.c.l.b16 %v994
      %v1192 = vunpack.c.l.b16 %v995
      %v1193 = vunpack.c.l.b16 %v996
      %v1194 = vunpack.c.l.b16 %v997
      %v1195 = vunpack.c.l.b16 %v998
      %v1196 = vunpack.c.l.b16 %v999
      %v1197 = vunpack.c.l.b16 %v1000
      %v1198 = vunpack.c.l.b16 %v1001
      %v1199 = vunpack.c.l.b16 %v1002
      %v1200 = vunpack.c.l.b16 %v1003
      %v1201 = vunpack.c.l.b16 %v1004
      %v1202 = vunpack.c.l.b16 %v1005
      %v1203 = vunpack.c.l.b16 %v1006
      %v1204 = vpack.c.b16 %v1167, %v1166
      %v1205 = vpack.c.b16 %v1169, %v1168
      %v1206 = vpack.c.b16 %v1171, %v1170
      %v1207 = vpack.c.b16 %v1173, %v1172
      %v1208 = vpack.c.b16 %v1175, %v1174
      %v1209 = vpack.c.b16 %v1177, %v1176
      %v1210 = vpack.c.b16 %v1179, %v1178
      %v1211 = vpack.c.b16 %v1181, %v1180
      %v1212 = vpack.c.b16 %v1183, %v1182
      %v1213 = vpack.c.b16 %v1185, %v1184
      %v1214 = vpack.c.b16 %v1187, %v1186
      %v1215 = vpack.c.b16 %v1189, %v1188
      %v1216 = vpack.c.b16 %v1191, %v1190
      %v1217 = vpack.c.b16 %v1193, %v1192
      %v1218 = vpack.c.b16 %v1195, %v1194
      %v1219 = vpack.c.b16 %v1197, %v1196
      %v1220 = vpack.c.b16 %v1199, %v1198
      %v1221 = vpack.c.b16 %v1201, %v1200
      %v1222 = vpack.c.b16 %v1203, %v1202
      %v1242 = vsel %vm663, %v1090, 0
      %v1245 = vsel %vm663, %v1093, 0
      %v1248 = vsel %vm663, %v1096, 0
      %v1251 = vsel %vm663, %v1099, 0
      %v1254 = vsel %vm663, %v1102, 0
      %v1257 = vsel %vm663, %v1105, 0
      %v1260 = vsel %vm663, %v1108, 0
      %v1263 = vsel %vm663, %v1111, 0
      %v1266 = vsel %vm676, %v1222, 0
      %1268 = vmatprep.subr.bf16.mxu0 0
      %1269 = vmatpush1.bf16.msra.mxu0 %v1211
      %1270 = vmatprep.subr.bf16.mxu0 0
      %1271 = vmatpush1.bf16.msra.mxu0 %v1210
      %1272 = vmatprep.subr.bf16.mxu0 0
      %1273 = vmatpush1.bf16.msra.mxu0 %v1209
      %1274 = vmatprep.subr.bf16.mxu0 0
      %1275 = vmatpush1.bf16.msra.mxu0 %v1208
      %1276 = vmatprep.subr.bf16.mxu0 0
      %1277 = vmatpush1.bf16.msra.mxu0 %v1207
      %1278 = vmatprep.subr.bf16.mxu0 0
      %1279 = vmatpush1.bf16.msra.mxu0 %v1206
      %1280 = vmatprep.subr.bf16.mxu0 0
      %1281 = vmatpush1.bf16.msra.mxu0 %v1205
      %1282 = vmatprep.subr.bf16.mxu0 0
      %1283 = vmatpush1.bf16.msra.mxu0 %v1204
      %1284 = vmatprep.subr.bf16.mxu0 0
      %1285 = vmatpush2.bf16.msra.mxu0 %v1219
      %1286 = vmatprep.subr.bf16.mxu0 0
      %1287 = vmatpush2.bf16.msra.mxu0 %v1218
      %1288 = vmatprep.subr.bf16.mxu0 0
      %1289 = vmatpush2.bf16.msra.mxu0 %v1217
      %1290 = vmatprep.subr.bf16.mxu0 0
      %1291 = vmatpush2.bf16.msra.mxu0 %v1216
      %1292 = vmatprep.subr.bf16.mxu0 0
      %1293 = vmatpush2.bf16.msra.mxu0 %v1215
      %1294 = vmatprep.subr.bf16.mxu0 0
      %1295 = vmatpush2.bf16.msra.mxu0 %v1214
      %1296 = vmatprep.subr.bf16.mxu0 0
      %1297 = vmatpush2.bf16.msra.mxu0 %v1213
      %1298 = vmatprep.subr.bf16.mxu0 0
      %1299 = vmatpush2.bf16.msra.mxu0 %v1212
      %1300 = vmatprep.mubr.bf16.mxu0 %v1089
      %1301 = vmatmul.mubr.bf16.gmra.mxu0 %v1088
      %v1302 = vpop.f32.mrf.mxu0
      %v1303 = vadd.f32 0.0, %v1302
      %v1304 = vpop.f32.mrf.mxu0
      %v1305 = vpop.f32.mrf.mxu0
      %v1306 = vadd.f32 0.0, %v1305
      %v1307 = vpop.f32.mrf.mxu0
      %1308 = vmatprep.mubr.bf16.mxu0 %v1092
      %1309 = vmatmul.mubr.bf16.gmra.mxu0 %v1091
      %v1310 = vpop.f32.mrf.mxu0
      %v1311 = vadd.f32 0.0, %v1310
      %v1312 = vpop.f32.mrf.mxu0
      %v1313 = vpop.f32.mrf.mxu0
      %v1314 = vadd.f32 0.0, %v1313
      %v1315 = vpop.f32.mrf.mxu0
      %1316 = vmatprep.mubr.bf16.mxu0 %v1095
      %1317 = vmatmul.mubr.bf16.gmra.mxu0 %v1094
      %v1318 = vpop.f32.mrf.mxu0
      %v1319 = vadd.f32 0.0, %v1318
      %v1320 = vpop.f32.mrf.mxu0
      %v1321 = vpop.f32.mrf.mxu0
      %v1322 = vadd.f32 0.0, %v1321
      %v1323 = vpop.f32.mrf.mxu0
      %1324 = vmatprep.mubr.bf16.mxu0 %v1098
      %1325 = vmatmul.mubr.bf16.gmra.mxu0 %v1097
      %v1326 = vpop.f32.mrf.mxu0
      %v1327 = vadd.f32 0.0, %v1326
      %v1328 = vpop.f32.mrf.mxu0
      %v1329 = vpop.f32.mrf.mxu0
      %v1330 = vadd.f32 0.0, %v1329
      %v1331 = vpop.f32.mrf.mxu0
      %1332 = vmatprep.mubr.bf16.mxu0 %v1101
      %1333 = vmatmul.mubr.bf16.gmra.mxu0 %v1100
      %v1334 = vpop.f32.mrf.mxu0
      %v1335 = vadd.f32 0.0, %v1334
      %v1336 = vpop.f32.mrf.mxu0
      %v1337 = vpop.f32.mrf.mxu0
      %v1338 = vadd.f32 0.0, %v1337
      %v1339 = vpop.f32.mrf.mxu0
      %1340 = vmatprep.mubr.bf16.mxu0 %v1104
      %1341 = vmatmul.mubr.bf16.gmra.mxu0 %v1103
      %v1342 = vpop.f32.mrf.mxu0
      %v1343 = vadd.f32 0.0, %v1342
      %v1344 = vpop.f32.mrf.mxu0
      %v1345 = vpop.f32.mrf.mxu0
      %v1346 = vadd.f32 0.0, %v1345
      %v1347 = vpop.f32.mrf.mxu0
      %1348 = vmatprep.mubr.bf16.mxu0 %v1107
      %1349 = vmatmul.mubr.bf16.gmra.mxu0 %v1106
      %v1350 = vpop.f32.mrf.mxu0
      %v1351 = vadd.f32 0.0, %v1350
      %v1352 = vpop.f32.mrf.mxu0
      %v1353 = vpop.f32.mrf.mxu0
      %v1354 = vadd.f32 0.0, %v1353
      %v1355 = vpop.f32.mrf.mxu0
      %1356 = vmatprep.mubr.bf16.mxu0 %v1110
      %1357 = vmatmul.mubr.bf16.gmra.mxu0 %v1109
      %v1358 = vpop.f32.mrf.mxu0
      %v1359 = vadd.f32 0.0, %v1358
      %v1360 = vpop.f32.mrf.mxu0
      %v1361 = vpop.f32.mrf.mxu0
      %v1362 = vadd.f32 0.0, %v1361
      %v1363 = vpop.f32.mrf.mxu0
      %1364 = vdwg.mxu0
      %1365 = vmatprep.subr.bf16.mxu0 0
      %1366 = vmatpush1.bf16.msra.mxu0 0
      %1367 = vmatprep.subr.bf16.mxu0 0
      %1368 = vmatpush1.bf16.msra.mxu0 0
      %1369 = vmatprep.subr.bf16.mxu0 0
      %1370 = vmatpush1.bf16.msra.mxu0 0
      %1371 = vmatprep.subr.bf16.mxu0 0
      %1372 = vmatpush1.bf16.msra.mxu0 0
      %1373 = vmatprep.subr.bf16.mxu0 0
      %1374 = vmatpush1.bf16.msra.mxu0 0
      %1375 = vmatprep.subr.bf16.mxu0 0
      %1376 = vmatpush1.bf16.msra.mxu0 %v1266
      %1377 = vmatprep.subr.bf16.mxu0 0
      %1378 = vmatpush1.bf16.msra.mxu0 %v1221
      %1379 = vmatprep.subr.bf16.mxu0 0
      %1380 = vmatpush1.bf16.msra.mxu0 %v1220
      %1381 = vmatprep.subr.bf16.mxu0 0
      %1382 = vmatpush2.bf16.msra.mxu0 0
      %1383 = vmatprep.subr.bf16.mxu0 0
      %1384 = vmatpush2.bf16.msra.mxu0 0
      %1385 = vmatprep.subr.bf16.mxu0 0
      %1386 = vmatpush2.bf16.msra.mxu0 0
      %1387 = vmatprep.subr.bf16.mxu0 0
      %1388 = vmatpush2.bf16.msra.mxu0 0
      %1389 = vmatprep.subr.bf16.mxu0 0
      %1390 = vmatpush2.bf16.msra.mxu0 0
      %1391 = vmatprep.subr.bf16.mxu0 0
      %1392 = vmatpush2.bf16.msra.mxu0 0
      %1393 = vmatprep.subr.bf16.mxu0 0
      %1394 = vmatpush2.bf16.msra.mxu0 0
      %1395 = vmatprep.subr.bf16.mxu0 0
      %1396 = vmatpush2.bf16.msra.mxu0 0
      %1397 = vmatprep.mubr.bf16.mxu0 0
      %1398 = vmatmul.mubr.bf16.gmra.mxu0 %v1242
      %v1399 = vpop.f32.mrf.mxu0
      %v1400 = vadd.f32 %v1303, %v1399
      %v1401 = vpop.f32.mrf.mxu0
      %v1402 = vpop.f32.mrf.mxu0
      %v1403 = vadd.f32 %v1306, %v1402
      %v1404 = vpop.f32.mrf.mxu0
      %1405 = vmatprep.mubr.bf16.mxu0 0
      %1406 = vmatmul.mubr.bf16.gmra.mxu0 %v1245
      %v1407 = vpop.f32.mrf.mxu0
      %v1408 = vadd.f32 %v1311, %v1407
      %v1409 = vpop.f32.mrf.mxu0
      %v1410 = vpop.f32.mrf.mxu0
      %v1411 = vadd.f32 %v1314, %v1410
      %v1412 = vpop.f32.mrf.mxu0
      %1413 = vmatprep.mubr.bf16.mxu0 0
      %1414 = vmatmul.mubr.bf16.gmra.mxu0 %v1248
      %v1415 = vpop.f32.mrf.mxu0
      %v1416 = vadd.f32 %v1319, %v1415
      %v1417 = vpop.f32.mrf.mxu0
      %v1418 = vpop.f32.mrf.mxu0
      %v1419 = vadd.f32 %v1322, %v1418
      %v1420 = vpop.f32.mrf.mxu0
      %1421 = vmatprep.mubr.bf16.mxu0 0
      %1422 = vmatmul.mubr.bf16.gmra.mxu0 %v1251
      %v1423 = vpop.f32.mrf.mxu0
      %v1424 = vadd.f32 %v1327, %v1423
      %v1425 = vpop.f32.mrf.mxu0
      %v1426 = vpop.f32.mrf.mxu0
      %v1427 = vadd.f32 %v1330, %v1426
      %v1428 = vpop.f32.mrf.mxu0
      %1429 = vmatprep.mubr.bf16.mxu0 0
      %1430 = vmatmul.mubr.bf16.gmra.mxu0 %v1254
      %v1431 = vpop.f32.mrf.mxu0
      %v1432 = vadd.f32 %v1335, %v1431
      %v1433 = vpop.f32.mrf.mxu0
      %v1434 = vpop.f32.mrf.mxu0
      %v1435 = vadd.f32 %v1338, %v1434
      %v1436 = vpop.f32.mrf.mxu0
      %1437 = vmatprep.mubr.bf16.mxu0 0
      %1438 = vmatmul.mubr.bf16.gmra.mxu0 %v1257
      %v1439 = vpop.f32.mrf.mxu0
      %v1440 = vadd.f32 %v1343, %v1439
      %v1441 = vpop.f32.mrf.mxu0
      %v1442 = vpop.f32.mrf.mxu0
      %v1443 = vadd.f32 %v1346, %v1442
      %v1444 = vpop.f32.mrf.mxu0
      %1445 = vmatprep.mubr.bf16.mxu0 0
      %1446 = vmatmul.mubr.bf16.gmra.mxu0 %v1260
      %v1447 = vpop.f32.mrf.mxu0
      %v1448 = vadd.f32 %v1351, %v1447
      %v1449 = vpop.f32.mrf.mxu0
      %v1450 = vpop.f32.mrf.mxu0
      %v1451 = vadd.f32 %v1354, %v1450
      %v1452 = vpop.f32.mrf.mxu0
      %1453 = vmatprep.mubr.bf16.mxu0 0
      %1454 = vmatmul.mubr.bf16.gmra.mxu0 %v1263
      %v1455 = vpop.f32.mrf.mxu0
      %v1456 = vadd.f32 %v1359, %v1455
      %v1457 = vpop.f32.mrf.mxu0
      %v1458 = vpop.f32.mrf.mxu0
      %v1459 = vadd.f32 %v1362, %v1458
      %v1460 = vpop.f32.mrf.mxu0
      %1461 = vdwg.mxu0
      %vm1478 = vcmask 1046528
      %v1479 = vrot.slane %v1400, 1
      %v1480 = vrot.slane %v1403, 1
      %v1481 = vsel %vm1478, %v1479, %v1480
      %v1482 = vrot.slane %v1408, 1
      %v1483 = vrot.slane %v1411, 1
      %v1484 = vsel %vm1478, %v1482, %v1483
      %v1485 = vrot.slane %v1416, 1
      %v1486 = vrot.slane %v1419, 1
      %v1487 = vsel %vm1478, %v1485, %v1486
      %v1488 = vrot.slane %v1424, 1
      %v1489 = vrot.slane %v1427, 1
      %v1490 = vsel %vm1478, %v1488, %v1489
      %v1491 = vrot.slane %v1432, 1
      %v1492 = vrot.slane %v1435, 1
      %v1493 = vsel %vm1478, %v1491, %v1492
      %v1494 = vrot.slane %v1440, 1
      %v1495 = vrot.slane %v1443, 1
      %v1496 = vsel %vm1478, %v1494, %v1495
      %v1497 = vrot.slane %v1448, 1
      %v1498 = vrot.slane %v1451, 1
      %v1499 = vsel %vm1478, %v1497, %v1498
      %v1500 = vrot.slane %v1456, 1
      %v1501 = vrot.slane %v1459, 1
      %v1502 = vsel %vm1478, %v1500, %v1501
      %1503 = vrot.lane.b32.xlu0 %v1481, 96
      %v1504 = vpop.permute.xlu0 %1503
      %1505 = vrot.lane.b32.xlu0 %v1480, 96
      %v1506 = vpop.permute.xlu0 %1505
      %1507 = vrot.lane.b32.xlu0 %v1484, 96
      %v1508 = vpop.permute.xlu0 %1507
      %1509 = vrot.lane.b32.xlu0 %v1483, 96
      %v1510 = vpop.permute.xlu0 %1509
      %1511 = vrot.lane.b32.xlu0 %v1487, 96
      %v1512 = vpop.permute.xlu0 %1511
      %1513 = vrot.lane.b32.xlu0 %v1486, 96
      %v1514 = vpop.permute.xlu0 %1513
      %1515 = vrot.lane.b32.xlu0 %v1490, 96
      %v1516 = vpop.permute.xlu0 %1515
      %1517 = vrot.lane.b32.xlu0 %v1489, 96
      %v1518 = vpop.permute.xlu0 %1517
      %1519 = vrot.lane.b32.xlu0 %v1493, 96
      %v1520 = vpop.permute.xlu0 %1519
      %1521 = vrot.lane.b32.xlu0 %v1492, 96
      %v1522 = vpop.permute.xlu0 %1521
      %1523 = vrot.lane.b32.xlu0 %v1496, 96
      %v1524 = vpop.permute.xlu0 %1523
      %1525 = vrot.lane.b32.xlu0 %v1495, 96
      %v1526 = vpop.permute.xlu0 %1525
      %1527 = vrot.lane.b32.xlu0 %v1499, 96
      %v1528 = vpop.permute.xlu0 %1527
      %1529 = vrot.lane.b32.xlu0 %v1498, 96
      %v1530 = vpop.permute.xlu0 %1529
      %1531 = vrot.lane.b32.xlu0 %v1502, 96
      %v1532 = vpop.permute.xlu0 %1531
      %1533 = vrot.lane.b32.xlu0 %v1501, 96
      %v1534 = vpop.permute.xlu0 %1533
      %v1551 = vadd.f32 %v1400, %v1504
      %v1552 = vadd.f32 %v1403, %v1506
      %v1553 = vadd.f32 %v1408, %v1508
      %v1554 = vadd.f32 %v1411, %v1510
      %v1555 = vadd.f32 %v1416, %v1512
      %v1556 = vadd.f32 %v1419, %v1514
      %v1557 = vadd.f32 %v1424, %v1516
      %v1558 = vadd.f32 %v1427, %v1518
      %v1559 = vadd.f32 %v1432, %v1520
      %v1560 = vadd.f32 %v1435, %v1522
      %v1561 = vadd.f32 %v1440, %v1524
      %v1562 = vadd.f32 %v1443, %v1526
      %v1563 = vadd.f32 %v1448, %v1528
      %v1564 = vadd.f32 %v1451, %v1530
      %v1565 = vadd.f32 %v1456, %v1532
      %v1566 = vadd.f32 %v1459, %v1534
      %v1568 = vlaneseq
      %v1569 = vshrl.u32 %v1568, 7
      %v1570 = vsub.s32 0, %v1569
      %v1571 = vrot.slane %v1007, %v1570
      %v1573 = vadd.f32 %v1551, %v1571
      %v1574 = vadd.f32 %v1552, %v1571
      %v1575 = vadd.f32 %v1553, %v1571
      %v1576 = vadd.f32 %v1554, %v1571
      %v1577 = vadd.f32 %v1555, %v1571
      %v1578 = vadd.f32 %v1556, %v1571
      %v1579 = vadd.f32 %v1557, %v1571
      %v1580 = vadd.f32 %v1558, %v1571
      %v1581 = vadd.f32 %v1559, %v1571
      %v1582 = vadd.f32 %v1560, %v1571
      %v1583 = vadd.f32 %v1561, %v1571
      %v1584 = vadd.f32 %v1562, %v1571
      %v1585 = vadd.f32 %v1563, %v1571
      %v1586 = vadd.f32 %v1564, %v1571
      %v1587 = vadd.f32 %v1565, %v1571
      %v1588 = vadd.f32 %v1566, %v1571
      %v1589 = vmax.f32 %v1573, 0.0
      %v1590 = vmax.f32 %v1574, 0.0
      %v1591 = vmax.f32 %v1575, 0.0
      %v1592 = vmax.f32 %v1576, 0.0
      %v1593 = vmax.f32 %v1577, 0.0
      %v1594 = vmax.f32 %v1578, 0.0
      %v1595 = vmax.f32 %v1579, 0.0
      %v1596 = vmax.f32 %v1580, 0.0
      %v1597 = vmax.f32 %v1581, 0.0
      %v1598 = vmax.f32 %v1582, 0.0
      %v1599 = vmax.f32 %v1583, 0.0
      %v1600 = vmax.f32 %v1584, 0.0
      %v1601 = vmax.f32 %v1585, 0.0
      %v1602 = vmax.f32 %v1586, 0.0
      %v1603 = vmax.f32 %v1587, 0.0
      %v1604 = vmax.f32 %v1588, 0.0
      %vm1605 = vcmask 261120
      %v1606 = vsel %vm1605, %v1589, -inf
      %v1607 = vsel %vm880, %v1590, -inf
      %v1608 = vmax.f32 %v1606, %v1607
      %v1609 = vrot.slane %v1608, 4
      %v1610 = vmax.f32 %v1608, %v1609
      %v1611 = vrot.slane %v1610, 2
      %v1612 = vmax.f32 %v1610, %v1611
      %v1613 = vrot.slane %v1612, 1
      %v1614 = vmax.f32 %v1612, %v1613
      %v1615 = vsel %vm1605, %v1591, -inf
      %v1616 = vsel %vm880, %v1592, -inf
      %v1617 = vmax.f32 %v1615, %v1616
      %v1618 = vrot.slane %v1617, 4
      %v1619 = vmax.f32 %v1617, %v1618
      %v1620 = vrot.slane %v1619, 2
      %v1621 = vmax.f32 %v1619, %v1620
      %v1622 = vrot.slane %v1621, 1
      %v1623 = vmax.f32 %v1621, %v1622
      %v1624 = vsel %vm1605, %v1593, -inf
      %v1625 = vsel %vm880, %v1594, -inf
      %v1626 = vmax.f32 %v1624, %v1625
      %v1627 = vrot.slane %v1626, 4
      %v1628 = vmax.f32 %v1626, %v1627
      %v1629 = vrot.slane %v1628, 2
      %v1630 = vmax.f32 %v1628, %v1629
      %v1631 = vrot.slane %v1630, 1
      %v1632 = vmax.f32 %v1630, %v1631
      %v1633 = vsel %vm1605, %v1595, -inf
      %v1634 = vsel %vm880, %v1596, -inf
      %v1635 = vmax.f32 %v1633, %v1634
      %v1636 = vrot.slane %v1635, 4
      %v1637 = vmax.f32 %v1635, %v1636
      %v1638 = vrot.slane %v1637, 2
      %v1639 = vmax.f32 %v1637, %v1638
      %v1640 = vrot.slane %v1639, 1
      %v1641 = vmax.f32 %v1639, %v1640
      %v1642 = vsel %vm1605, %v1597, -inf
      %v1643 = vsel %vm880, %v1598, -inf
      %v1644 = vmax.f32 %v1642, %v1643
      %v1645 = vrot.slane %v1644, 4
      %v1646 = vmax.f32 %v1644, %v1645
      %v1647 = vrot.slane %v1646, 2
      %v1648 = vmax.f32 %v1646, %v1647
      %v1649 = vrot.slane %v1648, 1
      %v1650 = vmax.f32 %v1648, %v1649
      %v1651 = vsel %vm1605, %v1599, -inf
      %v1652 = vsel %vm880, %v1600, -inf
      %v1653 = vmax.f32 %v1651, %v1652
      %v1654 = vrot.slane %v1653, 4
      %v1655 = vmax.f32 %v1653, %v1654
      %v1656 = vrot.slane %v1655, 2
      %v1657 = vmax.f32 %v1655, %v1656
      %v1658 = vrot.slane %v1657, 1
      %v1659 = vmax.f32 %v1657, %v1658
      %v1660 = vsel %vm1605, %v1601, -inf
      %v1661 = vsel %vm880, %v1602, -inf
      %v1662 = vmax.f32 %v1660, %v1661
      %v1663 = vrot.slane %v1662, 4
      %v1664 = vmax.f32 %v1662, %v1663
      %v1665 = vrot.slane %v1664, 2
      %v1666 = vmax.f32 %v1664, %v1665
      %v1667 = vrot.slane %v1666, 1
      %v1668 = vmax.f32 %v1666, %v1667
      %v1669 = vsel %vm1605, %v1603, -inf
      %v1670 = vsel %vm880, %v1604, -inf
      %v1671 = vmax.f32 %v1669, %v1670
      %v1672 = vrot.slane %v1671, 4
      %v1673 = vmax.f32 %v1671, %v1672
      %v1674 = vrot.slane %v1673, 2
      %v1675 = vmax.f32 %v1673, %v1674
      %v1676 = vrot.slane %v1675, 1
      %v1677 = vmax.f32 %v1675, %v1676
      %v1678 = vld [vmem:[%s429] sm:$0xf]
      %v1679 = vld [vmem:[%s7] sm:$0xf]
      %v1680 = vld [vmem:[%s7 + $0x4] sm:$0xf]
      %v1681 = vld [vmem:[%s8] sm:$0x1]
      %v1683 = vlaneseq
      %v1684 = vshrl.u32 %v1683, 7
      %v1685 = vsub.s32 0, %v1684
      %v1686 = vrot.slane %v1681, %v1685
      %v1690 = vunpack.c.l.b16 %v1679
      %v1691 = vunpack.c.l.b16 %v1680
      %v1692 = vpack.c.b16 %v1691, %v1690
      %vm1694 = vcmask 130048
      %v1696 = vsel %vm1694, %v1678, 0
      %1698 = vmatprep.subr.bf16.mxu0 0
      %1699 = vmatpush1.bf16.msra.mxu0 0
      %1700 = vmatprep.subr.bf16.mxu0 0
      %1701 = vmatpush1.bf16.msra.mxu0 0
      %1702 = vmatprep.subr.bf16.mxu0 0
      %1703 = vmatpush1.bf16.msra.mxu0 0
      %1704 = vmatprep.subr.bf16.mxu0 0
      %1705 = vmatpush1.bf16.msra.mxu0 0
      %1706 = vmatprep.subr.bf16.mxu0 0
      %1707 = vmatpush1.bf16.msra.mxu0 0
      %1708 = vmatprep.subr.bf16.mxu0 0
      %1709 = vmatpush1.bf16.msra.mxu0 0
      %1710 = vmatprep.subr.bf16.mxu0 0
      %1711 = vmatpush1.bf16.msra.mxu0 0
      %1712 = vmatprep.subr.bf16.mxu0 0
      %1713 = vmatpush1.bf16.msra.mxu0 %v1692
      %1714 = vmatprep.subr.bf16.mxu0 0
      %1715 = vmatpush2.bf16.msra.mxu0 0
      %1716 = vmatprep.subr.bf16.mxu0 0
      %1717 = vmatpush2.bf16.msra.mxu0 0
      %1718 = vmatprep.subr.bf16.mxu0 0
      %1719 = vmatpush2.bf16.msra.mxu0 0
      %1720 = vmatprep.subr.bf16.mxu0 0
      %1721 = vmatpush2.bf16.msra.mxu0 0
      %1722 = vmatprep.subr.bf16.mxu0 0
      %1723 = vmatpush2.bf16.msra.mxu0 0
      %1724 = vmatprep.subr.bf16.mxu0 0
      %1725 = vmatpush2.bf16.msra.mxu0 0
      %1726 = vmatprep.subr.bf16.mxu0 0
      %1727 = vmatpush2.bf16.msra.mxu0 0
      %1728 = vmatprep.subr.bf16.mxu0 0
      %1729 = vmatpush2.bf16.msra.mxu0 0
      %1730 = vmatprep.mubr.bf16.mxu0 0
      %1731 = vmatmul.mubr.bf16.gmra.mxu0 %v1696
      %v1732 = vpop.f32.mrf.mxu0
      %v1733 = vadd.f32 %v1686, %v1732
      %v1734 = vpop.f32.mrf.mxu0
      %v1735 = vpop.f32.mrf.mxu0
      %v1736 = vpop.f32.mrf.mxu0
      %1737 = vdwg.mxu0
      %v1738 = vld [vmem:[%s9] sm:$0xff]
      %v1739 = vld [vmem:[%s9 + $0x8] sm:$0xff]
      %v1740 = vld [vmem:[%s9 + $0x10] sm:$0xff]
      %v1741 = vld [vmem:[%s9 + $0x18] sm:$0xff]
      %v1742 = vld [vmem:[%s9 + $0x20] sm:$0xff]
      %v1743 = vld [vmem:[%s9 + $0x28] sm:$0xff]
      %v1744 = vld [vmem:[%s9 + $0x30] sm:$0xff]
      %v1745 = vld [vmem:[%s9 + $0x38] sm:$0xff]
      %v1746 = vld [vmem:[%s9 + $0x40] sm:$0xff]
      %v1747 = vld [vmem:[%s9 + $0x48] sm:$0xff]
      %v1748 = vld [vmem:[%s9 + $0x50] sm:$0xff]
      %v1749 = vld [vmem:[%s9 + $0x58] sm:$0xff]
      %v1750 = vld [vmem:[%s9 + $0x60] sm:$0xff]
      %v1751 = vld [vmem:[%s9 + $0x68] sm:$0xff]
      %v1752 = vld [vmem:[%s9 + $0x70] sm:$0xff]
      %v1753 = vld [vmem:[%s9 + $0x78] sm:$0xff]
      %vm1762 = vcmask 1041409
      %v1763 = vsel %vm1762, %v1623, %v1614
      %vm1764 = vcmask 1042434
      %v1765 = vsel %vm1764, %v1632, %v1763
      %vm1766 = vcmask 1043459
      %v1767 = vsel %vm1766, %v1641, %v1765
      %vm1768 = vcmask 1044484
      %v1769 = vsel %vm1768, %v1650, %v1767
      %vm1770 = vcmask 1045509
      %v1771 = vsel %vm1770, %v1659, %v1769
      %vm1772 = vcmask 1046534
      %v1773 = vsel %vm1772, %v1668, %v1771
      %vm1774 = vcmask 1047559
      %v1775 = vsel %vm1774, %v1677, %v1773
      %v1776 = vsel %vm1605, %v1775, 0
      %1778 = vmatprep.subr.mxu0 0.0
      %1779 = vmatpush1.msra.mxu0 0.0
      %1780 = vmatprep.subr.mxu0 0.0
      %1781 = vmatpush1.msra.mxu0 0.0
      %1782 = vmatprep.subr.mxu0 0.0
      %1783 = vmatpush1.msra.mxu0 0.0
      %1784 = vmatprep.subr.mxu0 0.0
      %1785 = vmatpush1.msra.mxu0 0.0
      %1786 = vmatprep.subr.mxu0 0.0
      %1787 = vmatpush1.msra.mxu0 0.0
      %1788 = vmatprep.subr.mxu0 0.0
      %1789 = vmatpush1.msra.mxu0 0.0
      %1790 = vmatprep.subr.mxu0 0.0
      %1791 = vmatpush1.msra.mxu0 0.0
      %1792 = vmatprep.subr.mxu0 0.0
      %1793 = vmatpush1.msra.mxu0 0.0
      %1794 = vmatprep.subr.mxu0 0.0
      %1795 = vmatpush1.msra.mxu0 0.0
      %1796 = vmatprep.subr.mxu0 0.0
      %1797 = vmatpush1.msra.mxu0 0.0
      %1798 = vmatprep.subr.mxu0 0.0
      %1799 = vmatpush1.msra.mxu0 0.0
      %1800 = vmatprep.subr.mxu0 0.0
      %1801 = vmatpush1.msra.mxu0 0.0
      %1802 = vmatprep.subr.mxu0 0.0
      %1803 = vmatpush1.msra.mxu0 %v1745
      %1804 = vmatprep.subr.mxu0 0.0
      %1805 = vmatpush1.msra.mxu0 %v1744
      %1806 = vmatprep.subr.mxu0 0.0
      %1807 = vmatpush1.msra.mxu0 %v1743
      %1808 = vmatprep.subr.mxu0 0.0
      %1809 = vmatpush1.msra.mxu0 %v1742
      %1810 = vmatprep.subr.mxu0 0.0
      %1811 = vmatpush2.msra.mxu0 0.0
      %1812 = vmatprep.subr.mxu0 0.0
      %1813 = vmatpush2.msra.mxu0 0.0
      %1814 = vmatprep.subr.mxu0 0.0
      %1815 = vmatpush2.msra.mxu0 0.0
      %1816 = vmatprep.subr.mxu0 0.0
      %1817 = vmatpush2.msra.mxu0 0.0
      %1818 = vmatprep.subr.mxu0 0.0
      %1819 = vmatpush2.msra.mxu0 0.0
      %1820 = vmatprep.subr.mxu0 0.0
      %1821 = vmatpush2.msra.mxu0 0.0
      %1822 = vmatprep.subr.mxu0 0.0
      %1823 = vmatpush2.msra.mxu0 0.0
      %1824 = vmatprep.subr.mxu0 0.0
      %1825 = vmatpush2.msra.mxu0 0.0
      %1826 = vmatprep.subr.mxu0 0.0
      %1827 = vmatpush2.msra.mxu0 0.0
      %1828 = vmatprep.subr.mxu0 0.0
      %1829 = vmatpush2.msra.mxu0 0.0
      %1830 = vmatprep.subr.mxu0 0.0
      %1831 = vmatpush2.msra.mxu0 0.0
      %1832 = vmatprep.subr.mxu0 0.0
      %1833 = vmatpush2.msra.mxu0 0.0
      %1834 = vmatprep.subr.mxu0 0.0
      %1835 = vmatpush2.msra.mxu0 0.0
      %1836 = vmatprep.subr.mxu0 0.0
      %1837 = vmatpush2.msra.mxu0 0.0
      %1838 = vmatprep.subr.mxu0 0.0
      %1839 = vmatpush2.msra.mxu0 0.0
      %1840 = vmatprep.subr.mxu0 0.0
      %1841 = vmatpush2.msra.mxu0 0.0
      %1842 = vmatprep.mubr.f32.mxu0 0.0
      %1843 = vmatmul.mubr.f32.gmra.mxu0 %v1776
      %v1844 = vpop.f32.mrf.mxu0
      %v1845 = vadd.f32 0.0, %v1844
      %v1846 = vpop.f32.mrf.mxu0
      %1847 = vdwg.mxu0
      %v1856 = vsel %vm1762, %v894, %v887
      %v1857 = vsel %vm1764, %v901, %v1856
      %v1858 = vsel %vm1766, %v908, %v1857
      %v1859 = vsel %vm1768, %v915, %v1858
      %v1860 = vsel %vm1770, %v922, %v1859
      %v1861 = vsel %vm1772, %v929, %v1860
      %v1862 = vsel %vm1774, %v936, %v1861
      %v1863 = vsel %vm1605, %v1862, 0
      %1865 = vmatprep.subr.mxu0 0.0
      %1866 = vmatpush1.msra.mxu0 0.0
      %1867 = vmatprep.subr.mxu0 0.0
      %1868 = vmatpush1.msra.mxu0 0.0
      %1869 = vmatprep.subr.mxu0 0.0
      %1870 = vmatpush1.msra.mxu0 0.0
      %1871 = vmatprep.subr.mxu0 0.0
      %1872 = vmatpush1.msra.mxu0 0.0
      %1873 = vmatprep.subr.mxu0 0.0
      %1874 = vmatpush1.msra.mxu0 0.0
      %1875 = vmatprep.subr.mxu0 0.0
      %1876 = vmatpush1.msra.mxu0 0.0
      %1877 = vmatprep.subr.mxu0 0.0
      %1878 = vmatpush1.msra.mxu0 0.0
      %1879 = vmatprep.subr.mxu0 0.0
      %1880 = vmatpush1.msra.mxu0 0.0
      %1881 = vmatprep.subr.mxu0 0.0
      %1882 = vmatpush1.msra.mxu0 0.0
      %1883 = vmatprep.subr.mxu0 0.0
      %1884 = vmatpush1.msra.mxu0 0.0
      %1885 = vmatprep.subr.mxu0 0.0
      %1886 = vmatpush1.msra.mxu0 0.0
      %1887 = vmatprep.subr.mxu0 0.0
      %1888 = vmatpush1.msra.mxu0 0.0
      %1889 = vmatprep.subr.mxu0 0.0
      %1890 = vmatpush1.msra.mxu0 %v1741
      %1891 = vmatprep.subr.mxu0 0.0
      %1892 = vmatpush1.msra.mxu0 %v1740
      %1893 = vmatprep.subr.mxu0 0.0
      %1894 = vmatpush1.msra.mxu0 %v1739
      %1895 = vmatprep.subr.mxu0 0.0
      %1896 = vmatpush1.msra.mxu0 %v1738
      %1897 = vmatprep.subr.mxu0 0.0
      %1898 = vmatpush2.msra.mxu0 0.0
      %1899 = vmatprep.subr.mxu0 0.0
      %1900 = vmatpush2.msra.mxu0 0.0
      %1901 = vmatprep.subr.mxu0 0.0
      %1902 = vmatpush2.msra.mxu0 0.0
      %1903 = vmatprep.subr.mxu0 0.0
      %1904 = vmatpush2.msra.mxu0 0.0
      %1905 = vmatprep.subr.mxu0 0.0
      %1906 = vmatpush2.msra.mxu0 0.0
      %1907 = vmatprep.subr.mxu0 0.0
      %1908 = vmatpush2.msra.mxu0 0.0
      %1909 = vmatprep.subr.mxu0 0.0
      %1910 = vmatpush2.msra.mxu0 0.0
      %1911 = vmatprep.subr.mxu0 0.0
      %1912 = vmatpush2.msra.mxu0 0.0
      %1913 = vmatprep.subr.mxu0 0.0
      %1914 = vmatpush2.msra.mxu0 0.0
      %1915 = vmatprep.subr.mxu0 0.0
      %1916 = vmatpush2.msra.mxu0 0.0
      %1917 = vmatprep.subr.mxu0 0.0
      %1918 = vmatpush2.msra.mxu0 0.0
      %1919 = vmatprep.subr.mxu0 0.0
      %1920 = vmatpush2.msra.mxu0 0.0
      %1921 = vmatprep.subr.mxu0 0.0
      %1922 = vmatpush2.msra.mxu0 0.0
      %1923 = vmatprep.subr.mxu0 0.0
      %1924 = vmatpush2.msra.mxu0 0.0
      %1925 = vmatprep.subr.mxu0 0.0
      %1926 = vmatpush2.msra.mxu0 0.0
      %1927 = vmatprep.subr.mxu0 0.0
      %1928 = vmatpush2.msra.mxu0 0.0
      %1929 = vmatprep.mubr.f32.mxu0 0.0
      %1930 = vmatmul.mubr.f32.gmra.mxu0 %v1863
      %v1931 = vpop.f32.mrf.mxu0
      %v1932 = vadd.f32 %v1845, %v1931
      %v1933 = vpop.f32.mrf.mxu0
      %1934 = vdwg.mxu0
      %vm1935 = vcmask 523264
      %v1937 = vsel %vm1935, %v1733, 0
      %1939 = vmatprep.subr.mxu0 0.0
      %1940 = vmatpush1.msra.mxu0 0.0
      %1941 = vmatprep.subr.mxu0 0.0
      %1942 = vmatpush1.msra.mxu0 0.0
      %1943 = vmatprep.subr.mxu0 0.0
      %1944 = vmatpush1.msra.mxu0 0.0
      %1945 = vmatprep.subr.mxu0 0.0
      %1946 = vmatpush1.msra.mxu0 0.0
      %1947 = vmatprep.subr.mxu0 0.0
      %1948 = vmatpush1.msra.mxu0 0.0
      %1949 = vmatprep.subr.mxu0 0.0
      %1950 = vmatpush1.msra.mxu0 0.0
      %1951 = vmatprep.subr.mxu0 0.0
      %1952 = vmatpush1.msra.mxu0 0.0
      %1953 = vmatprep.subr.mxu0 0.0
      %1954 = vmatpush1.msra.mxu0 0.0
      %1955 = vmatprep.subr.mxu0 0.0
      %1956 = vmatpush1.msra.mxu0 %v1753
      %1957 = vmatprep.subr.mxu0 0.0
      %1958 = vmatpush1.msra.mxu0 %v1752
      %1959 = vmatprep.subr.mxu0 0.0
      %1960 = vmatpush1.msra.mxu0 %v1751
      %1961 = vmatprep.subr.mxu0 0.0
      %1962 = vmatpush1.msra.mxu0 %v1750
      %1963 = vmatprep.subr.mxu0 0.0
      %1964 = vmatpush1.msra.mxu0 %v1749
      %1965 = vmatprep.subr.mxu0 0.0
      %1966 = vmatpush1.msra.mxu0 %v1748
      %1967 = vmatprep.subr.mxu0 0.0
      %1968 = vmatpush1.msra.mxu0 %v1747
      %1969 = vmatprep.subr.mxu0 0.0
      %1970 = vmatpush1.msra.mxu0 %v1746
      %1971 = vmatprep.subr.mxu0 0.0
      %1972 = vmatpush2.msra.mxu0 0.0
      %1973 = vmatprep.subr.mxu0 0.0
      %1974 = vmatpush2.msra.mxu0 0.0
      %1975 = vmatprep.subr.mxu0 0.0
      %1976 = vmatpush2.msra.mxu0 0.0
      %1977 = vmatprep.subr.mxu0 0.0
      %1978 = vmatpush2.msra.mxu0 0.0
      %1979 = vmatprep.subr.mxu0 0.0
      %1980 = vmatpush2.msra.mxu0 0.0
      %1981 = vmatprep.subr.mxu0 0.0
      %1982 = vmatpush2.msra.mxu0 0.0
      %1983 = vmatprep.subr.mxu0 0.0
      %1984 = vmatpush2.msra.mxu0 0.0
      %1985 = vmatprep.subr.mxu0 0.0
      %1986 = vmatpush2.msra.mxu0 0.0
      %1987 = vmatprep.subr.mxu0 0.0
      %1988 = vmatpush2.msra.mxu0 0.0
      %1989 = vmatprep.subr.mxu0 0.0
      %1990 = vmatpush2.msra.mxu0 0.0
      %1991 = vmatprep.subr.mxu0 0.0
      %1992 = vmatpush2.msra.mxu0 0.0
      %1993 = vmatprep.subr.mxu0 0.0
      %1994 = vmatpush2.msra.mxu0 0.0
      %1995 = vmatprep.subr.mxu0 0.0
      %1996 = vmatpush2.msra.mxu0 0.0
      %1997 = vmatprep.subr.mxu0 0.0
      %1998 = vmatpush2.msra.mxu0 0.0
      %1999 = vmatprep.subr.mxu0 0.0
      %2000 = vmatpush2.msra.mxu0 0.0
      %2001 = vmatprep.subr.mxu0 0.0
      %2002 = vmatpush2.msra.mxu0 0.0
      %2003 = vmatprep.mubr.f32.mxu0 0.0
      %2004 = vmatmul.mubr.f32.gmra.mxu0 %v1937
      %v2005 = vpop.f32.mrf.mxu0
      %v2006 = vadd.f32 0.0, %v2005
      %v2007 = vpop.f32.mrf.mxu0
      %2008 = vdwg.mxu0
      %v2009 = vadd.f32 %v1932, %v2006
      %v2010 = vld [vmem:[#allocation2] sm:$0x1]
      %v2012 = vlaneseq
      %v2013 = vshrl.u32 %v2012, 7
      %v2014 = vsub.s32 0, %v2013
      %v2015 = vrot.slane %v2010, %v2014
      %v2017 = vadd.f32 %v2009, %v2015
      %vm2018 = vcmask 7168
      %2019 = vst.msk [vmem:[%s433] sm:$0xff] %vm2018, %v2017
      %p2020 = scmp.lt.s32.totalorder %s24, 1
      %s2021 = scalar_select %p2020, %s24, 1
      %s2022 = smul.addr %s2021, 8
      %s2023 = scalar_lea.vmem %s11, %s2022
      // Predicated region
      $region65: #{tpu_custom_call.1} parent=63 // pred_check
        %p2024 = pneg %p288
      $region66: #{tpu_custom_call.1} parent=63 // pred_check_branch
        %2026 = sbr.rel (%p2024) target = $region68
      $region67: #{tpu_custom_call.1} parent=63 // pred_region
        _
      $region68: #{tpu_custom_call.1} parent=63 // pred_fallthru
        _
    $region64: #{tpu_custom_call.1} parent=5 // pred_fallthru
      _
    %p2027 = scmp.le.s32.totalorder 2, %s19
    // Predicated region
    $region69: #{tpu_custom_call.1} parent=5 // pred_check
      %p2028 = pneg %p2027
    $region70: #{tpu_custom_call.1} parent=5 // pred_check_branch
      %2030 = sbr.rel (%p2028) target = $region72
    $region71: #{tpu_custom_call.1} parent=5 // pred_region
      %s2031 = ssub.s32 %s19, 2
      // Predicated region
      $region73: #{tpu_custom_call.1} parent=71 // pred_check
        %p2032 = pneg %p294
      $region74: #{tpu_custom_call.1} parent=71 // pred_check_branch
        %2034 = sbr.rel (%p2032) target = $region76
      $region75: #{tpu_custom_call.1} parent=71 // pred_region
        %p2035 = scmp.lt.s32.totalorder %s25, 1
        %s2036 = scalar_select %p2035, %s25, 1
        %s2037 = smul.addr %s2036, 8
        %s2038 = scalar_lea.vmem %s11, %s2037
      $region76: #{tpu_custom_call.1} parent=71 // pred_fallthru
        _
    $region72: #{tpu_custom_call.1} parent=5 // pred_fallthru
      _
  $region6: #{tpu_custom_call.1} parent=0 // loop_footer
    %s23 = sadd.s32 1, %s19
  $region7: #{tpu_custom_call.1} parent=0 // loop_footer_branch
    %18 = sbr.rel target = $region3
  $region8: #{tpu_custom_call.1} parent=0 // loop_exit
    _

</llo_original>
